<compile_context>
chip_gen: v7x
topology: tpu7x:2x2x1
jax: 0.10.0
libtpu: 0.0.40
codegen_flags: <defaults>
</compile_context>

<pallas_src>
import functools

import jax
import jax.numpy as jnp
from jax.experimental import pallas as pl
from jax.experimental.pallas import tpu as pltpu


# ----------------------------- Pallas kernel -------------------------------
def _nbeats_fused_kernel(x_ref,                   # (bt, L)   un-flipped insample_y
                         w0_ref, b0_ref,          # (NB, L, D), (NB, 1, D)   [w0 pre-flipped on input axis]
                         wh_ref, bh_ref,          # (NB*3, D, D), (NB*3, 1, D)
                         wob_ref, bob_ref,        # (NB, D, L), (NB, 1, L)   [pre-flipped on output axis]
                         wof_ref, bof_ref,        # (NB, D, F), (NB, 1, F)
                         fcast_ref):              # (bt, F)   output
    """All NBEATS blocks fused; blocks are a static unroll over resident weights.

    Per block:  theta = Lout(relu(L3(relu(L2(relu(L1(L0(x))))))))
                backcast = h @ wo_back;  forecast += h @ wo_fore
                residuals <- residuals - backcast   (insample_mask is all-ones)
    The time-flip of the PyTorch model is folded into w0 / wo_back / bo_back,
    so everything here is in un-flipped time coordinates.
    """
    n_blocks = w0_ref.shape[0]
    n_hidden = wh_ref.shape[0] // n_blocks

    x = x_ref[...]                                                  # (bt, L)
    # forecast init: last observed value broadcast over the horizon.
    fcast = jnp.broadcast_to(x[:, -1:], fcast_ref.shape)            # (bt, F)

    for blk in range(n_blocks):                                     # static unroll
        # L0: no activation after the first Linear (matches PyTorch layer order).
        h = (jnp.dot(x, w0_ref[blk], preferred_element_type=jnp.float32)
             + b0_ref[blk])
        # L1..L3: Linear + ReLU.
        # TODO(synk): Dropout(p=0.2) is only active in torch training mode;
        # eval semantics (identity) are implemented here.
        for j in range(n_hidden):                                   # static unroll
            idx = blk * n_hidden + j
            h = jnp.maximum(
                jnp.dot(h, wh_ref[idx], preferred_element_type=jnp.float32)
                + bh_ref[idx], 0.0)

        # Output layer split into backcast / forecast halves (no lane-offset slice).
        backcast = (jnp.dot(h, wob_ref[blk], preferred_element_type=jnp.float32)
                    + bob_ref[blk])
        fcast = fcast + (jnp.dot(h, wof_ref[blk],
                                 preferred_element_type=jnp.float32)
                         + bof_ref[blk])
        x = x - backcast

    fcast_ref[...] = fcast


# ----------------------------- param packing --------------------------------
def prepare_params(params, seq_len):
    """Stack per-block params; fold the time-flip into w0 / wo_back / bo_back.

    Weights are stored as (in, out).  The PyTorch model flips the input along
    time before the blocks; instead we flip w0 along its input axis and the
    backcast output (wo_back, bo_back) along its output axis so the kernel
    works entirely in un-flipped coordinates.
    """
    L = seq_len
    w0 = jnp.stack([p["w0"][::-1, :] for p in params])              # (NB, L, D) flipped in
    b0 = jnp.stack([p["b0"] for p in params])                       # (NB, 1, D)
    wh = jnp.concatenate(
        [jnp.stack([p["w1"], p["w2"], p["w3"]]) for p in params])   # (NB*3, D, D)
    bh = jnp.concatenate(
        [jnp.stack([p["b1"], p["b2"], p["b3"]]) for p in params])   # (NB*3, 1, D)
    wob = jnp.stack([p["wo"][:, :L][:, ::-1] for p in params])      # (NB, D, L) flipped out
    bob = jnp.stack([p["bo"][:, :L][:, ::-1] for p in params])      # (NB, 1, L) flipped out
    wof = jnp.stack([p["wo"][:, L:] for p in params])               # (NB, D, F)
    bof = jnp.stack([p["bo"][:, L:] for p in params])               # (NB, 1, F)
    return (w0, b0, wh, bh, wob, bob, wof, bof)


# ----------------------------- model wrapper --------------------------------
@functools.partial(jax.jit, static_argnames=("h_len", "c_in", "batch_tile"))
def nbeats_forward(x_enc, stacked, h_len, c_in, batch_tile=None):
    """Reproduces Model.forward (identity stacks, eval mode).

    x_enc: (B, seq_len, c_in).  Returns forecast of shape (B, h_len, c_in).
    """
    w0, b0, wh, bh, wob, bob, wof, bof = stacked
    B = x_enc.shape[0]
    insample_y = x_enc.reshape(B, -1).astype(jnp.float32)            # (B, L), un-flipped
    L = insample_y.shape[1]
    F = c_in * h_len

    # Batch tile: full batch while it fits comfortably; multiples of 8 (f32
    # sublanes) when tiling so the parallel axis can shard across v7x's 2 TCs.
    if batch_tile is not None:
        bt = batch_tile
    elif B <= 1024:
        bt = B
    else:
        bt = 1024
    if bt < B:
        bt = max(8, (bt // 8) * 8)
    nbt = pl.cdiv(B, bt)

    whole = lambda shape: pl.BlockSpec(shape, lambda i: (0,) * len(shape))

    grid_spec = pltpu.PrefetchScalarGridSpec(
        num_scalar_prefetch=0,
        grid=(nbt,),
        in_specs=[
            pl.BlockSpec((bt, L), lambda i: (i, 0)),   # insample_y batch tile
            whole(w0.shape),                            # weights: VMEM-resident,
            whole(b0.shape),                            # constant index maps
            whole(wh.shape),
            whole(bh.shape),
            whole(wob.shape),
            whole(bob.shape),
            whole(wof.shape),
            whole(bof.shape),
        ],
        out_specs=pl.BlockSpec((bt, F), lambda i: (i, 0)),
    )

    fcast = pl.pallas_call(
        _nbeats_fused_kernel,
        grid_spec=grid_spec,
        out_shape=jax.ShapeDtypeStruct((B, F), jnp.float32),
        compiler_params=pltpu.CompilerParams(
            dimension_semantics=("parallel",)),
    )(insample_y, w0, b0, wh, bh, wob, bob, wof, bof)

    return fcast.reshape(B, h_len, c_in)


# ----------------------------- param init -----------------------------------
def init_params(key, seq_len, h_len, c_in, d_model, n_stacks=3):
    """Deterministic PyTorch-Linear-style init; weights stored as (in, out)."""
    n_theta = seq_len + c_in * h_len

    def linear(k, fan_in, fan_out):
        kw, kb = jax.random.split(k)
        bound = 1.0 / jnp.sqrt(jnp.float32(fan_in))
        w = jax.random.uniform(kw, (fan_in, fan_out), jnp.float32, -bound, bound)
        b = jax.random.uniform(kb, (1, fan_out), jnp.float32, -bound, bound)
        return w, b

    params = []
    keys = jax.random.split(key, n_stacks)
    for sk in keys:
        k0, k1, k2, k3, ko = jax.random.split(sk, 5)
        w0, b0 = linear(k0, seq_len, d_model)
        w1, b1 = linear(k1, d_model, d_model)
        w2, b2 = linear(k2, d_model, d_model)
        w3, b3 = linear(k3, d_model, d_model)
        wo, bo = linear(ko, d_model, n_theta)
        params.append(dict(w0=w0, b0=b0, w1=w1, b1=b1, w2=w2, b2=b2,
                           w3=w3, b3=b3, wo=wo, bo=bo))
    return params


# ----------------------------- pure-JAX reference ---------------------------
def nbeats_reference(x_enc, params, h_len, c_in, seq_len):
    """Mirrors the PyTorch forward exactly (flip, residual stacking)."""
    B = x_enc.shape[0]
    insample_y = x_enc.reshape(B, -1).astype(jnp.float32)
    residuals = insample_y[:, ::-1]
    forecast = insample_y[:, -1:][:, :, None]
    for p in params:
        h = residuals @ p["w0"] + p["b0"]
        h = jnp.maximum(h @ p["w1"] + p["b1"], 0.0)
        h = jnp.maximum(h @ p["w2"] + p["b2"], 0.0)
        h = jnp.maximum(h @ p["w3"] + p["b3"], 0.0)
        theta = h @ p["wo"] + p["bo"]
        backcast = theta[:, :seq_len]
        bf = theta[:, seq_len:].reshape(B, h_len, c_in)
        residuals = residuals - backcast
        forecast = forecast + bf
    return forecast


# ----------------------------- main ------------------------------------------
if __name__ == "__main__":
    # Small config consistent with the module: features='S' -> c_in=1.
    B, seq_len, pred_len, d_model, c_in = 4, 16, 8, 32, 1

    key = jax.random.PRNGKey(0)
    k_x, k_p = jax.random.split(key)
    x_enc = jax.random.normal(k_x, (B, seq_len, c_in), dtype=jnp.float32)
    params = init_params(k_p, seq_len, pred_len, c_in, d_model)
    stacked = prepare_params(params, seq_len)

    out = nbeats_forward(x_enc, stacked, pred_len, c_in)
    out = jax.block_until_ready(out)

    ref = nbeats_reference(x_enc, params, pred_len, c_in, seq_len)
    assert out.shape == (B, pred_len, c_in), out.shape
    assert jnp.allclose(out, ref, atol=1e-4, rtol=1e-4), "mismatch vs reference"

    print("KERNEL_OK")
</pallas_src>

<mosaic_0001>
module attributes {stable_mosaic.version = 11 : i64} {
  func.func @_nbeats_fused_kernel(%arg0: i32, %arg1: memref<4x16xf32, #tpu.memory_space<vmem>>, %arg2: memref<3x16x32xf32, #tpu.memory_space<vmem>>, %arg3: memref<3x1x32xf32, #tpu.memory_space<vmem>>, %arg4: memref<9x32x32xf32, #tpu.memory_space<vmem>>, %arg5: memref<9x1x32xf32, #tpu.memory_space<vmem>>, %arg6: memref<3x32x16xf32, #tpu.memory_space<vmem>>, %arg7: memref<3x1x16xf32, #tpu.memory_space<vmem>>, %arg8: memref<3x32x8xf32, #tpu.memory_space<vmem>>, %arg9: memref<3x1x8xf32, #tpu.memory_space<vmem>>, %arg10: memref<4x8xf32, #tpu.memory_space<vmem>>) attributes {dimension_semantics = [#tpu.dimension_semantics<parallel>], iteration_bounds = array<i64: 1>, scalar_prefetch = 0 : i64, scratch_operands = 0 : i64, tpu.core_type = #tpu.core_type<tc>, window_params = [{transform_indices = @transform_0, window_bounds = array<i64: 4, 16>}, {pipeline_mode = #tpu.pipeline_mode<synchronous>, transform_indices = @transform_1, window_bounds = array<i64: 3, 16, 32>}, {pipeline_mode = #tpu.pipeline_mode<synchronous>, transform_indices = @transform_2, window_bounds = array<i64: 3, 1, 32>}, {pipeline_mode = #tpu.pipeline_mode<synchronous>, transform_indices = @transform_3, window_bounds = array<i64: 9, 32, 32>}, {pipeline_mode = #tpu.pipeline_mode<synchronous>, transform_indices = @transform_4, window_bounds = array<i64: 9, 1, 32>}, {pipeline_mode = #tpu.pipeline_mode<synchronous>, transform_indices = @transform_5, window_bounds = array<i64: 3, 32, 16>}, {pipeline_mode = #tpu.pipeline_mode<synchronous>, transform_indices = @transform_6, window_bounds = array<i64: 3, 1, 16>}, {pipeline_mode = #tpu.pipeline_mode<synchronous>, transform_indices = @transform_7, window_bounds = array<i64: 3, 32, 8>}, {pipeline_mode = #tpu.pipeline_mode<synchronous>, transform_indices = @transform_8, window_bounds = array<i64: 3, 1, 8>}, {transform_indices = @transform_9, window_bounds = array<i64: 4, 8>}]} {
    %c0 = arith.constant 0 : index
    %c0_0 = arith.constant 0 : index
    %0 = vector.load %arg1[%c0, %c0_0] : memref<4x16xf32, #tpu.memory_space<vmem>>, vector<4x16xf32>
    %1 = vector.extract_strided_slice %0 {offsets = [0, 15], sizes = [4, 1], strides = [1, 1]} : vector<4x16xf32> to vector<4x1xf32>
    %2 = vector.shape_cast %1 : vector<4x1xf32> to vector<4x1xf32>
    %3 = vector.broadcast %2 : vector<4x1xf32> to vector<4x8xf32>
    %c0_1 = arith.constant 0 : index
    %c0_2 = arith.constant 0 : index
    %c0_3 = arith.constant 0 : index
    %4 = vector.load %arg2[%c0_1, %c0_2, %c0_3] : memref<3x16x32xf32, #tpu.memory_space<vmem>>, vector<1x16x32xf32>
    %5 = vector.shape_cast %4 : vector<1x16x32xf32> to vector<16x32xf32>
    %cst = arith.constant dense<0.000000e+00> : vector<4x32xf32>
    %6 = tpu.matmul %0, %5, %cst {dimension_numbers = #tpu.dot_dimension_numbers<[1], [0], [0], [1], [0, 0, 1, 1], [], []>} : vector<4x16xf32>, vector<16x32xf32>, vector<4x32xf32> -> vector<4x32xf32>
    %c0_4 = arith.constant 0 : index
    %c0_5 = arith.constant 0 : index
    %c0_6 = arith.constant 0 : index
    %7 = vector.load %arg3[%c0_4, %c0_5, %c0_6] : memref<3x1x32xf32, #tpu.memory_space<vmem>>, vector<1x1x32xf32>
    %8 = vector.shape_cast %7 : vector<1x1x32xf32> to vector<1x32xf32>
    %9 = vector.broadcast %8 : vector<1x32xf32> to vector<4x32xf32>
    %10 = arith.addf %6, %9 : vector<4x32xf32>
    %c0_7 = arith.constant 0 : index
    %c0_8 = arith.constant 0 : index
    %c0_9 = arith.constant 0 : index
    %11 = vector.load %arg4[%c0_7, %c0_8, %c0_9] : memref<9x32x32xf32, #tpu.memory_space<vmem>>, vector<1x32x32xf32>
    %12 = vector.shape_cast %11 : vector<1x32x32xf32> to vector<32x32xf32>
    %cst_10 = arith.constant dense<0.000000e+00> : vector<4x32xf32>
    %13 = tpu.matmul %10, %12, %cst_10 {dimension_numbers = #tpu.dot_dimension_numbers<[1], [0], [0], [1], [0, 0, 1, 1], [], []>} : vector<4x32xf32>, vector<32x32xf32>, vector<4x32xf32> -> vector<4x32xf32>
    %c0_11 = arith.constant 0 : index
    %c0_12 = arith.constant 0 : index
    %c0_13 = arith.constant 0 : index
    %14 = vector.load %arg5[%c0_11, %c0_12, %c0_13] : memref<9x1x32xf32, #tpu.memory_space<vmem>>, vector<1x1x32xf32>
    %15 = vector.shape_cast %14 : vector<1x1x32xf32> to vector<1x32xf32>
    %16 = vector.broadcast %15 : vector<1x32xf32> to vector<4x32xf32>
    %17 = arith.addf %13, %16 : vector<4x32xf32>
    %cst_14 = arith.constant 0.000000e+00 : f32
    %18 = vector.broadcast %cst_14 : f32 to vector<4x32xf32>
    %19 = arith.maximumf %17, %18 : vector<4x32xf32>
    %c1 = arith.constant 1 : index
    %c0_15 = arith.constant 0 : index
    %c0_16 = arith.constant 0 : index
    %20 = vector.load %arg4[%c1, %c0_15, %c0_16] : memref<9x32x32xf32, #tpu.memory_space<vmem>>, vector<1x32x32xf32>
    %21 = vector.shape_cast %20 : vector<1x32x32xf32> to vector<32x32xf32>
    %cst_17 = arith.constant dense<0.000000e+00> : vector<4x32xf32>
    %22 = tpu.matmul %19, %21, %cst_17 {dimension_numbers = #tpu.dot_dimension_numbers<[1], [0], [0], [1], [0, 0, 1, 1], [], []>} : vector<4x32xf32>, vector<32x32xf32>, vector<4x32xf32> -> vector<4x32xf32>
    %c1_18 = arith.constant 1 : index
    %c0_19 = arith.constant 0 : index
    %c0_20 = arith.constant 0 : index
    %23 = vector.load %arg5[%c1_18, %c0_19, %c0_20] : memref<9x1x32xf32, #tpu.memory_space<vmem>>, vector<1x1x32xf32>
    %24 = vector.shape_cast %23 : vector<1x1x32xf32> to vector<1x32xf32>
    %25 = vector.broadcast %24 : vector<1x32xf32> to vector<4x32xf32>
    %26 = arith.addf %22, %25 : vector<4x32xf32>
    %cst_21 = arith.constant 0.000000e+00 : f32
    %27 = vector.broadcast %cst_21 : f32 to vector<4x32xf32>
    %28 = arith.maximumf %26, %27 : vector<4x32xf32>
    %c2 = arith.constant 2 : index
    %c0_22 = arith.constant 0 : index
    %c0_23 = arith.constant 0 : index
    %29 = vector.load %arg4[%c2, %c0_22, %c0_23] : memref<9x32x32xf32, #tpu.memory_space<vmem>>, vector<1x32x32xf32>
    %30 = vector.shape_cast %29 : vector<1x32x32xf32> to vector<32x32xf32>
    %cst_24 = arith.constant dense<0.000000e+00> : vector<4x32xf32>
    %31 = tpu.matmul %28, %30, %cst_24 {dimension_numbers = #tpu.dot_dimension_numbers<[1], [0], [0], [1], [0, 0, 1, 1], [], []>} : vector<4x32xf32>, vector<32x32xf32>, vector<4x32xf32> -> vector<4x32xf32>
    %c2_25 = arith.constant 2 : index
    %c0_26 = arith.constant 0 : index
    %c0_27 = arith.constant 0 : index
    %32 = vector.load %arg5[%c2_25, %c0_26, %c0_27] : memref<9x1x32xf32, #tpu.memory_space<vmem>>, vector<1x1x32xf32>
    %33 = vector.shape_cast %32 : vector<1x1x32xf32> to vector<1x32xf32>
    %34 = vector.broadcast %33 : vector<1x32xf32> to vector<4x32xf32>
    %35 = arith.addf %31, %34 : vector<4x32xf32>
    %cst_28 = arith.constant 0.000000e+00 : f32
    %36 = vector.broadcast %cst_28 : f32 to vector<4x32xf32>
    %37 = arith.maximumf %35, %36 : vector<4x32xf32>
    %c0_29 = arith.constant 0 : index
    %c0_30 = arith.constant 0 : index
    %c0_31 = arith.constant 0 : index
    %38 = vector.load %arg6[%c0_29, %c0_30, %c0_31] : memref<3x32x16xf32, #tpu.memory_space<vmem>>, vector<1x32x16xf32>
    %39 = vector.shape_cast %38 : vector<1x32x16xf32> to vector<32x16xf32>
    %cst_32 = arith.constant dense<0.000000e+00> : vector<4x16xf32>
    %40 = tpu.matmul %37, %39, %cst_32 {dimension_numbers = #tpu.dot_dimension_numbers<[1], [0], [0], [1], [0, 0, 1, 1], [], []>} : vector<4x32xf32>, vector<32x16xf32>, vector<4x16xf32> -> vector<4x16xf32>
    %c0_33 = arith.constant 0 : index
    %c0_34 = arith.constant 0 : index
    %c0_35 = arith.constant 0 : index
    %41 = vector.load %arg7[%c0_33, %c0_34, %c0_35] : memref<3x1x16xf32, #tpu.memory_space<vmem>>, vector<1x1x16xf32>
    %42 = vector.shape_cast %41 : vector<1x1x16xf32> to vector<1x16xf32>
    %43 = vector.broadcast %42 : vector<1x16xf32> to vector<4x16xf32>
    %44 = arith.addf %40, %43 : vector<4x16xf32>
    %c0_36 = arith.constant 0 : index
    %c0_37 = arith.constant 0 : index
    %c0_38 = arith.constant 0 : index
    %45 = vector.load %arg8[%c0_36, %c0_37, %c0_38] : memref<3x32x8xf32, #tpu.memory_space<vmem>>, vector<1x32x8xf32>
    %46 = vector.shape_cast %45 : vector<1x32x8xf32> to vector<32x8xf32>
    %cst_39 = arith.constant dense<0.000000e+00> : vector<4x8xf32>
    %47 = tpu.matmul %37, %46, %cst_39 {dimension_numbers = #tpu.dot_dimension_numbers<[1], [0], [0], [1], [0, 0, 1, 1], [], []>} : vector<4x32xf32>, vector<32x8xf32>, vector<4x8xf32> -> vector<4x8xf32>
    %c0_40 = arith.constant 0 : index
    %c0_41 = arith.constant 0 : index
    %c0_42 = arith.constant 0 : index
    %48 = vector.load %arg9[%c0_40, %c0_41, %c0_42] : memref<3x1x8xf32, #tpu.memory_space<vmem>>, vector<1x1x8xf32>
    %49 = vector.shape_cast %48 : vector<1x1x8xf32> to vector<1x8xf32>
    %50 = vector.broadcast %49 : vector<1x8xf32> to vector<4x8xf32>
    %51 = arith.addf %47, %50 : vector<4x8xf32>
    %52 = arith.addf %3, %51 : vector<4x8xf32>
    %53 = arith.subf %0, %44 : vector<4x16xf32>
    %c1_43 = arith.constant 1 : index
    %c0_44 = arith.constant 0 : index
    %c0_45 = arith.constant 0 : index
    %54 = vector.load %arg2[%c1_43, %c0_44, %c0_45] : memref<3x16x32xf32, #tpu.memory_space<vmem>>, vector<1x16x32xf32>
    %55 = vector.shape_cast %54 : vector<1x16x32xf32> to vector<16x32xf32>
    %cst_46 = arith.constant dense<0.000000e+00> : vector<4x32xf32>
    %56 = tpu.matmul %53, %55, %cst_46 {dimension_numbers = #tpu.dot_dimension_numbers<[1], [0], [0], [1], [0, 0, 1, 1], [], []>} : vector<4x16xf32>, vector<16x32xf32>, vector<4x32xf32> -> vector<4x32xf32>
    %c1_47 = arith.constant 1 : index
    %c0_48 = arith.constant 0 : index
    %c0_49 = arith.constant 0 : index
    %57 = vector.load %arg3[%c1_47, %c0_48, %c0_49] : memref<3x1x32xf32, #tpu.memory_space<vmem>>, vector<1x1x32xf32>
    %58 = vector.shape_cast %57 : vector<1x1x32xf32> to vector<1x32xf32>
    %59 = vector.broadcast %58 : vector<1x32xf32> to vector<4x32xf32>
    %60 = arith.addf %56, %59 : vector<4x32xf32>
    %c3 = arith.constant 3 : index
    %c0_50 = arith.constant 0 : index
    %c0_51 = arith.constant 0 : index
    %61 = vector.load %arg4[%c3, %c0_50, %c0_51] : memref<9x32x32xf32, #tpu.memory_space<vmem>>, vector<1x32x32xf32>
    %62 = vector.shape_cast %61 : vector<1x32x32xf32> to vector<32x32xf32>
    %cst_52 = arith.constant dense<0.000000e+00> : vector<4x32xf32>
    %63 = tpu.matmul %60, %62, %cst_52 {dimension_numbers = #tpu.dot_dimension_numbers<[1], [0], [0], [1], [0, 0, 1, 1], [], []>} : vector<4x32xf32>, vector<32x32xf32>, vector<4x32xf32> -> vector<4x32xf32>
    %c3_53 = arith.constant 3 : index
    %c0_54 = arith.constant 0 : index
    %c0_55 = arith.constant 0 : index
    %64 = vector.load %arg5[%c3_53, %c0_54, %c0_55] : memref<9x1x32xf32, #tpu.memory_space<vmem>>, vector<1x1x32xf32>
    %65 = vector.shape_cast %64 : vector<1x1x32xf32> to vector<1x32xf32>
    %66 = vector.broadcast %65 : vector<1x32xf32> to vector<4x32xf32>
    %67 = arith.addf %63, %66 : vector<4x32xf32>
    %cst_56 = arith.constant 0.000000e+00 : f32
    %68 = vector.broadcast %cst_56 : f32 to vector<4x32xf32>
    %69 = arith.maximumf %67, %68 : vector<4x32xf32>
    %c4 = arith.constant 4 : index
    %c0_57 = arith.constant 0 : index
    %c0_58 = arith.constant 0 : index
    %70 = vector.load %arg4[%c4, %c0_57, %c0_58] : memref<9x32x32xf32, #tpu.memory_space<vmem>>, vector<1x32x32xf32>
    %71 = vector.shape_cast %70 : vector<1x32x32xf32> to vector<32x32xf32>
    %cst_59 = arith.constant dense<0.000000e+00> : vector<4x32xf32>
    %72 = tpu.matmul %69, %71, %cst_59 {dimension_numbers = #tpu.dot_dimension_numbers<[1], [0], [0], [1], [0, 0, 1, 1], [], []>} : vector<4x32xf32>, vector<32x32xf32>, vector<4x32xf32> -> vector<4x32xf32>
    %c4_60 = arith.constant 4 : index
    %c0_61 = arith.constant 0 : index
    %c0_62 = arith.constant 0 : index
    %73 = vector.load %arg5[%c4_60, %c0_61, %c0_62] : memref<9x1x32xf32, #tpu.memory_space<vmem>>, vector<1x1x32xf32>
    %74 = vector.shape_cast %73 : vector<1x1x32xf32> to vector<1x32xf32>
    %75 = vector.broadcast %74 : vector<1x32xf32> to vector<4x32xf32>
    %76 = arith.addf %72, %75 : vector<4x32xf32>
    %cst_63 = arith.constant 0.000000e+00 : f32
    %77 = vector.broadcast %cst_63 : f32 to vector<4x32xf32>
    %78 = arith.maximumf %76, %77 : vector<4x32xf32>
    %c5 = arith.constant 5 : index
    %c0_64 = arith.constant 0 : index
    %c0_65 = arith.constant 0 : index
    %79 = vector.load %arg4[%c5, %c0_64, %c0_65] : memref<9x32x32xf32, #tpu.memory_space<vmem>>, vector<1x32x32xf32>
    %80 = vector.shape_cast %79 : vector<1x32x32xf32> to vector<32x32xf32>
    %cst_66 = arith.constant dense<0.000000e+00> : vector<4x32xf32>
    %81 = tpu.matmul %78, %80, %cst_66 {dimension_numbers = #tpu.dot_dimension_numbers<[1], [0], [0], [1], [0, 0, 1, 1], [], []>} : vector<4x32xf32>, vector<32x32xf32>, vector<4x32xf32> -> vector<4x32xf32>
    %c5_67 = arith.constant 5 : index
    %c0_68 = arith.constant 0 : index
    %c0_69 = arith.constant 0 : index
    %82 = vector.load %arg5[%c5_67, %c0_68, %c0_69] : memref<9x1x32xf32, #tpu.memory_space<vmem>>, vector<1x1x32xf32>
    %83 = vector.shape_cast %82 : vector<1x1x32xf32> to vector<1x32xf32>
    %84 = vector.broadcast %83 : vector<1x32xf32> to vector<4x32xf32>
    %85 = arith.addf %81, %84 : vector<4x32xf32>
    %cst_70 = arith.constant 0.000000e+00 : f32
    %86 = vector.broadcast %cst_70 : f32 to vector<4x32xf32>
    %87 = arith.maximumf %85, %86 : vector<4x32xf32>
    %c1_71 = arith.constant 1 : index
    %c0_72 = arith.constant 0 : index
    %c0_73 = arith.constant 0 : index
    %88 = vector.load %arg6[%c1_71, %c0_72, %c0_73] : memref<3x32x16xf32, #tpu.memory_space<vmem>>, vector<1x32x16xf32>
    %89 = vector.shape_cast %88 : vector<1x32x16xf32> to vector<32x16xf32>
    %cst_74 = arith.constant dense<0.000000e+00> : vector<4x16xf32>
    %90 = tpu.matmul %87, %89, %cst_74 {dimension_numbers = #tpu.dot_dimension_numbers<[1], [0], [0], [1], [0, 0, 1, 1], [], []>} : vector<4x32xf32>, vector<32x16xf32>, vector<4x16xf32> -> vector<4x16xf32>
    %c1_75 = arith.constant 1 : index
    %c0_76 = arith.constant 0 : index
    %c0_77 = arith.constant 0 : index
    %91 = vector.load %arg7[%c1_75, %c0_76, %c0_77] : memref<3x1x16xf32, #tpu.memory_space<vmem>>, vector<1x1x16xf32>
    %92 = vector.shape_cast %91 : vector<1x1x16xf32> to vector<1x16xf32>
    %93 = vector.broadcast %92 : vector<1x16xf32> to vector<4x16xf32>
    %94 = arith.addf %90, %93 : vector<4x16xf32>
    %c1_78 = arith.constant 1 : index
    %c0_79 = arith.constant 0 : index
    %c0_80 = arith.constant 0 : index
    %95 = vector.load %arg8[%c1_78, %c0_79, %c0_80] : memref<3x32x8xf32, #tpu.memory_space<vmem>>, vector<1x32x8xf32>
    %96 = vector.shape_cast %95 : vector<1x32x8xf32> to vector<32x8xf32>
    %cst_81 = arith.constant dense<0.000000e+00> : vector<4x8xf32>
    %97 = tpu.matmul %87, %96, %cst_81 {dimension_numbers = #tpu.dot_dimension_numbers<[1], [0], [0], [1], [0, 0, 1, 1], [], []>} : vector<4x32xf32>, vector<32x8xf32>, vector<4x8xf32> -> vector<4x8xf32>
    %c1_82 = arith.constant 1 : index
    %c0_83 = arith.constant 0 : index
    %c0_84 = arith.constant 0 : index
    %98 = vector.load %arg9[%c1_82, %c0_83, %c0_84] : memref<3x1x8xf32, #tpu.memory_space<vmem>>, vector<1x1x8xf32>
    %99 = vector.shape_cast %98 : vector<1x1x8xf32> to vector<1x8xf32>
    %100 = vector.broadcast %99 : vector<1x8xf32> to vector<4x8xf32>
    %101 = arith.addf %97, %100 : vector<4x8xf32>
    %102 = arith.addf %52, %101 : vector<4x8xf32>
    %103 = arith.subf %53, %94 : vector<4x16xf32>
    %c2_85 = arith.constant 2 : index
    %c0_86 = arith.constant 0 : index
    %c0_87 = arith.constant 0 : index
    %104 = vector.load %arg2[%c2_85, %c0_86, %c0_87] : memref<3x16x32xf32, #tpu.memory_space<vmem>>, vector<1x16x32xf32>
    %105 = vector.shape_cast %104 : vector<1x16x32xf32> to vector<16x32xf32>
    %cst_88 = arith.constant dense<0.000000e+00> : vector<4x32xf32>
    %106 = tpu.matmul %103, %105, %cst_88 {dimension_numbers = #tpu.dot_dimension_numbers<[1], [0], [0], [1], [0, 0, 1, 1], [], []>} : vector<4x16xf32>, vector<16x32xf32>, vector<4x32xf32> -> vector<4x32xf32>
    %c2_89 = arith.constant 2 : index
    %c0_90 = arith.constant 0 : index
    %c0_91 = arith.constant 0 : index
    %107 = vector.load %arg3[%c2_89, %c0_90, %c0_91] : memref<3x1x32xf32, #tpu.memory_space<vmem>>, vector<1x1x32xf32>
    %108 = vector.shape_cast %107 : vector<1x1x32xf32> to vector<1x32xf32>
    %109 = vector.broadcast %108 : vector<1x32xf32> to vector<4x32xf32>
    %110 = arith.addf %106, %109 : vector<4x32xf32>
    %c6 = arith.constant 6 : index
    %c0_92 = arith.constant 0 : index
    %c0_93 = arith.constant 0 : index
    %111 = vector.load %arg4[%c6, %c0_92, %c0_93] : memref<9x32x32xf32, #tpu.memory_space<vmem>>, vector<1x32x32xf32>
    %112 = vector.shape_cast %111 : vector<1x32x32xf32> to vector<32x32xf32>
    %cst_94 = arith.constant dense<0.000000e+00> : vector<4x32xf32>
    %113 = tpu.matmul %110, %112, %cst_94 {dimension_numbers = #tpu.dot_dimension_numbers<[1], [0], [0], [1], [0, 0, 1, 1], [], []>} : vector<4x32xf32>, vector<32x32xf32>, vector<4x32xf32> -> vector<4x32xf32>
    %c6_95 = arith.constant 6 : index
    %c0_96 = arith.constant 0 : index
    %c0_97 = arith.constant 0 : index
    %114 = vector.load %arg5[%c6_95, %c0_96, %c0_97] : memref<9x1x32xf32, #tpu.memory_space<vmem>>, vector<1x1x32xf32>
    %115 = vector.shape_cast %114 : vector<1x1x32xf32> to vector<1x32xf32>
    %116 = vector.broadcast %115 : vector<1x32xf32> to vector<4x32xf32>
    %117 = arith.addf %113, %116 : vector<4x32xf32>
    %cst_98 = arith.constant 0.000000e+00 : f32
    %118 = vector.broadcast %cst_98 : f32 to vector<4x32xf32>
    %119 = arith.maximumf %117, %118 : vector<4x32xf32>
    %c7 = arith.constant 7 : index
    %c0_99 = arith.constant 0 : index
    %c0_100 = arith.constant 0 : index
    %120 = vector.load %arg4[%c7, %c0_99, %c0_100] : memref<9x32x32xf32, #tpu.memory_space<vmem>>, vector<1x32x32xf32>
    %121 = vector.shape_cast %120 : vector<1x32x32xf32> to vector<32x32xf32>
    %cst_101 = arith.constant dense<0.000000e+00> : vector<4x32xf32>
    %122 = tpu.matmul %119, %121, %cst_101 {dimension_numbers = #tpu.dot_dimension_numbers<[1], [0], [0], [1], [0, 0, 1, 1], [], []>} : vector<4x32xf32>, vector<32x32xf32>, vector<4x32xf32> -> vector<4x32xf32>
    %c7_102 = arith.constant 7 : index
    %c0_103 = arith.constant 0 : index
    %c0_104 = arith.constant 0 : index
    %123 = vector.load %arg5[%c7_102, %c0_103, %c0_104] : memref<9x1x32xf32, #tpu.memory_space<vmem>>, vector<1x1x32xf32>
    %124 = vector.shape_cast %123 : vector<1x1x32xf32> to vector<1x32xf32>
    %125 = vector.broadcast %124 : vector<1x32xf32> to vector<4x32xf32>
    %126 = arith.addf %122, %125 : vector<4x32xf32>
    %cst_105 = arith.constant 0.000000e+00 : f32
    %127 = vector.broadcast %cst_105 : f32 to vector<4x32xf32>
    %128 = arith.maximumf %126, %127 : vector<4x32xf32>
    %c8 = arith.constant 8 : index
    %c0_106 = arith.constant 0 : index
    %c0_107 = arith.constant 0 : index
    %129 = vector.load %arg4[%c8, %c0_106, %c0_107] : memref<9x32x32xf32, #tpu.memory_space<vmem>>, vector<1x32x32xf32>
    %130 = vector.shape_cast %129 : vector<1x32x32xf32> to vector<32x32xf32>
    %cst_108 = arith.constant dense<0.000000e+00> : vector<4x32xf32>
    %131 = tpu.matmul %128, %130, %cst_108 {dimension_numbers = #tpu.dot_dimension_numbers<[1], [0], [0], [1], [0, 0, 1, 1], [], []>} : vector<4x32xf32>, vector<32x32xf32>, vector<4x32xf32> -> vector<4x32xf32>
    %c8_109 = arith.constant 8 : index
    %c0_110 = arith.constant 0 : index
    %c0_111 = arith.constant 0 : index
    %132 = vector.load %arg5[%c8_109, %c0_110, %c0_111] : memref<9x1x32xf32, #tpu.memory_space<vmem>>, vector<1x1x32xf32>
    %133 = vector.shape_cast %132 : vector<1x1x32xf32> to vector<1x32xf32>
    %134 = vector.broadcast %133 : vector<1x32xf32> to vector<4x32xf32>
    %135 = arith.addf %131, %134 : vector<4x32xf32>
    %cst_112 = arith.constant 0.000000e+00 : f32
    %136 = vector.broadcast %cst_112 : f32 to vector<4x32xf32>
    %137 = arith.maximumf %135, %136 : vector<4x32xf32>
    %c2_113 = arith.constant 2 : index
    %c0_114 = arith.constant 0 : index
    %c0_115 = arith.constant 0 : index
    %138 = vector.load %arg8[%c2_113, %c0_114, %c0_115] : memref<3x32x8xf32, #tpu.memory_space<vmem>>, vector<1x32x8xf32>
    %139 = vector.shape_cast %138 : vector<1x32x8xf32> to vector<32x8xf32>
    %cst_116 = arith.constant dense<0.000000e+00> : vector<4x8xf32>
    %140 = tpu.matmul %137, %139, %cst_116 {dimension_numbers = #tpu.dot_dimension_numbers<[1], [0], [0], [1], [0, 0, 1, 1], [], []>} : vector<4x32xf32>, vector<32x8xf32>, vector<4x8xf32> -> vector<4x8xf32>
    %c2_117 = arith.constant 2 : index
    %c0_118 = arith.constant 0 : index
    %c0_119 = arith.constant 0 : index
    %141 = vector.load %arg9[%c2_117, %c0_118, %c0_119] : memref<3x1x8xf32, #tpu.memory_space<vmem>>, vector<1x1x8xf32>
    %142 = vector.shape_cast %141 : vector<1x1x8xf32> to vector<1x8xf32>
    %143 = vector.broadcast %142 : vector<1x8xf32> to vector<4x8xf32>
    %144 = arith.addf %140, %143 : vector<4x8xf32>
    %145 = arith.addf %102, %144 : vector<4x8xf32>
    %c0_120 = arith.constant 0 : index
    %c0_121 = arith.constant 0 : index
    %146 = vector.load %arg10[%c0_120, %c0_121] : memref<4x8xf32, #tpu.memory_space<vmem>>, vector<4x8xf32>
    tpu.vector_store %arg10[%c0_120, %c0_121], %145 {strides = array<i32>} : memref<4x8xf32, #tpu.memory_space<vmem>>, vector<4x8xf32>,
    return
  }
  func.func @transform_0(%arg0: i32) -> (i32, i32) {
    %c0_i32 = arith.constant 0 : i32
    %c0_i32_0 = arith.constant 0 : i32
    return %arg0, %c0_i32 : i32, i32
  }
  func.func @transform_1(%arg0: i32) -> (i32, i32, i32) {
    %c0_i32 = arith.constant 0 : i32
    %c0_i32_0 = arith.constant 0 : i32
    %c0_i32_1 = arith.constant 0 : i32
    %c0_i32_2 = arith.constant 0 : i32
    return %c0_i32, %c0_i32_0, %c0_i32_1 : i32, i32, i32
  }
  func.func @transform_2(%arg0: i32) -> (i32, i32, i32) {
    %c0_i32 = arith.constant 0 : i32
    %c0_i32_0 = arith.constant 0 : i32
    %c0_i32_1 = arith.constant 0 : i32
    %c0_i32_2 = arith.constant 0 : i32
    return %c0_i32, %c0_i32_0, %c0_i32_1 : i32, i32, i32
  }
  func.func @transform_3(%arg0: i32) -> (i32, i32, i32) {
    %c0_i32 = arith.constant 0 : i32
    %c0_i32_0 = arith.constant 0 : i32
    %c0_i32_1 = arith.constant 0 : i32
    %c0_i32_2 = arith.constant 0 : i32
    return %c0_i32, %c0_i32_0, %c0_i32_1 : i32, i32, i32
  }
  func.func @transform_4(%arg0: i32) -> (i32, i32, i32) {
    %c0_i32 = arith.constant 0 : i32
    %c0_i32_0 = arith.constant 0 : i32
    %c0_i32_1 = arith.constant 0 : i32
    %c0_i32_2 = arith.constant 0 : i32
    return %c0_i32, %c0_i32_0, %c0_i32_1 : i32, i32, i32
  }
  func.func @transform_5(%arg0: i32) -> (i32, i32, i32) {
    %c0_i32 = arith.constant 0 : i32
    %c0_i32_0 = arith.constant 0 : i32
    %c0_i32_1 = arith.constant 0 : i32
    %c0_i32_2 = arith.constant 0 : i32
    return %c0_i32, %c0_i32_0, %c0_i32_1 : i32, i32, i32
  }
  func.func @transform_6(%arg0: i32) -> (i32, i32, i32) {
    %c0_i32 = arith.constant 0 : i32
    %c0_i32_0 = arith.constant 0 : i32
    %c0_i32_1 = arith.constant 0 : i32
    %c0_i32_2 = arith.constant 0 : i32
    return %c0_i32, %c0_i32_0, %c0_i32_1 : i32, i32, i32
  }
  func.func @transform_7(%arg0: i32) -> (i32, i32, i32) {
    %c0_i32 = arith.constant 0 : i32
    %c0_i32_0 = arith.constant 0 : i32
    %c0_i32_1 = arith.constant 0 : i32
    %c0_i32_2 = arith.constant 0 : i32
    return %c0_i32, %c0_i32_0, %c0_i32_1 : i32, i32, i32
  }
  func.func @transform_8(%arg0: i32) -> (i32, i32, i32) {
    %c0_i32 = arith.constant 0 : i32
    %c0_i32_0 = arith.constant 0 : i32
    %c0_i32_1 = arith.constant 0 : i32
    %c0_i32_2 = arith.constant 0 : i32
    return %c0_i32, %c0_i32_0, %c0_i32_1 : i32, i32, i32
  }
  func.func @transform_9(%arg0: i32) -> (i32, i32) {
    %c0_i32 = arith.constant 0 : i32
    %c0_i32_0 = arith.constant 0 : i32
    return %arg0, %c0_i32 : i32, i32
  }
}

</mosaic_0001>

<llo_original>
// kernel: nbeats_forward.1
$region0: #{nbeats_forward.1}
  #allocation0 [shape = 'u32[]', space=smem, size = 0x4, offset = 0x4, fixed_abs, tag = 'smem constant byte address 0x4 - core index']
  #allocation1 [shape = 'u32[144,128]{1,0:T(1,128)}', space=vmem, size = 0x12000, scoped, tag = 'internal scratch']
  %s0 = inlined_call_operand.vmem [shape: f32[4,16], index: 0, kind: input, shape index: {}]
  %s1 = inlined_call_operand.vmem [shape: f32[3,16,32], index: 1, kind: input, shape index: {}]
  %s2 = inlined_call_operand.vmem [shape: f32[3,1,32], index: 2, kind: input, shape index: {}]
  %s3 = inlined_call_operand.hbm [shape: f32[9,32,32], index: 3, kind: input, shape index: {}]
  %s4 = inlined_call_operand.vmem [shape: f32[9,1,32], index: 4, kind: input, shape index: {}]
  %s5 = inlined_call_operand.vmem [shape: f32[3,32,16], index: 5, kind: input, shape index: {}]
  %s6 = inlined_call_operand.vmem [shape: f32[3,1,16], index: 6, kind: input, shape index: {}]
  %s7 = inlined_call_operand.vmem [shape: f32[3,32,8], index: 7, kind: input, shape index: {}]
  %s8 = inlined_call_operand.vmem [shape: f32[3,1,8], index: 8, kind: input, shape index: {}]
  %s9 = inlined_call_operand.hbm [shape: f32[4,8], index: 9, kind: output, shape index: {}]
  %s10 = sld [smem:[#allocation0]]
  $region50: #{nbeats_forward.1} parent=0
    _
  %s12 = ssub.s32 1, %s10
  %s13 = scalar_select 0, %s12, %s10
  $region1: #{nbeats_forward.1} parent=0
    #allocation2 [shape = 'u8[147456]{0}', space=vmem, size = 0x24000, scoped, tag = 'input window, operand 3, single buffered']
    #allocation3 [shape = 's32[1]{0}', space=sflag, size = 0x4, scoped, tag = 'scoped memory for nbeats_forward.1']
    #allocation4 [shape = 's32[1]{0}', space=sflag, size = 0x4, scoped, tag = 'scoped memory for nbeats_forward.1']
    #allocation5 [shape = 'u8[2048]{0}', space=vmem, size = 0x800, scoped, tag = 'output window, operand 0, single buffered']
    %14 = vsyncpa [#allocation3], 0
    %15 = vsyncpa [#allocation4], 0
    // Predicated region
    $region2: #{nbeats_forward.1} parent=1 // pred_check
      _
    $region3: #{nbeats_forward.1} parent=1 // pred_check_branch
      %17 = sbr.rel (0) target = $region5
    $region4: #{nbeats_forward.1} parent=1 // pred_region
      _
    $region5: #{nbeats_forward.1} parent=1 // pred_fallthru
      _
    // Predicated region
    $region6: #{nbeats_forward.1} parent=1 // pred_check
      _
    $region7: #{nbeats_forward.1} parent=1 // pred_check_branch
      %19 = sbr.rel (0) target = $region9
    $region8: #{nbeats_forward.1} parent=1 // pred_region
      _
    $region9: #{nbeats_forward.1} parent=1 // pred_fallthru
      _
    // Predicated region
    $region10: #{nbeats_forward.1} parent=1 // pred_check
      _
    $region11: #{nbeats_forward.1} parent=1 // pred_check_branch
      %21 = sbr.rel (0) target = $region13
    $region12: #{nbeats_forward.1} parent=1 // pred_region
      _
    $region13: #{nbeats_forward.1} parent=1 // pred_fallthru
      _
    // Predicated region
    $region14: #{nbeats_forward.1} parent=1 // pred_check
      _
    $region15: #{nbeats_forward.1} parent=1 // pred_check_branch
      %23 = sbr.rel (0) target = $region17
    $region16: #{nbeats_forward.1} parent=1 // pred_region
      %s25 = ssub.s32 4608, 4608
      %26 = vsyncadd [#allocation3], %s25
      %s27 = sshll.u32 [#allocation2], 4
      %s28 = int_to_ptr.vmem [resolvable:$true] %s27
      %33 = dma.hbm_to_vmem [thread:$0]  %s3, 4608, %s28, [#allocation3], 128, 128, 8
    $region17: #{nbeats_forward.1} parent=1 // pred_fallthru
      _
    // Predicated region
    $region18: #{nbeats_forward.1} parent=1 // pred_check
      _
    $region19: #{nbeats_forward.1} parent=1 // pred_check_branch
      %35 = sbr.rel (0) target = $region21
    $region20: #{nbeats_forward.1} parent=1 // pred_region
      _
    $region21: #{nbeats_forward.1} parent=1 // pred_fallthru
      _
    // Predicated region
    $region22: #{nbeats_forward.1} parent=1 // pred_check
      _
    $region23: #{nbeats_forward.1} parent=1 // pred_check_branch
      %37 = sbr.rel (0) target = $region25
    $region24: #{nbeats_forward.1} parent=1 // pred_region
      _
    $region25: #{nbeats_forward.1} parent=1 // pred_fallthru
      _
    // Predicated region
    $region26: #{nbeats_forward.1} parent=1 // pred_check
      _
    $region27: #{nbeats_forward.1} parent=1 // pred_check_branch
      %39 = sbr.rel (0) target = $region29
    $region28: #{nbeats_forward.1} parent=1 // pred_region
      _
    $region29: #{nbeats_forward.1} parent=1 // pred_fallthru
      _
    // Predicated region
    $region30: #{nbeats_forward.1} parent=1 // pred_check
      _
    $region31: #{nbeats_forward.1} parent=1 // pred_check_branch
      %41 = sbr.rel (0) target = $region33
    $region32: #{nbeats_forward.1} parent=1 // pred_region
      _
    $region33: #{nbeats_forward.1} parent=1 // pred_fallthru
      _
    // Predicated region
    $region34: #{nbeats_forward.1} parent=1 // pred_check
      _
    $region35: #{nbeats_forward.1} parent=1 // pred_check_branch
      %43 = sbr.rel (0) target = $region37
    $region36: #{nbeats_forward.1} parent=1 // pred_region
      _
    $region37: #{nbeats_forward.1} parent=1 // pred_fallthru
      _
    // Predicated region
    $region38: #{nbeats_forward.1} parent=1 // pred_check
      _
    $region39: #{nbeats_forward.1} parent=1 // pred_check_branch
      %45 = sbr.rel (0) target = $region41
    $region40: #{nbeats_forward.1} parent=1 // pred_region
      %46 = dma.done [#allocation3], 4608
    $region41: #{nbeats_forward.1} parent=1 // pred_fallthru
      _
    %v47 = vld [vmem:[%s0] sm:$0xf]
    %49 = vset.pattern.permute.xlu0 15
    %50 = vperm.xlu0 %49, %v47
    %v51 = vpop.permute.xlu0 %50
    %v53 = vld [vmem:[%s1] sm:$0xff]
    %v54 = vld [vmem:[%s1 + $0x8] sm:$0xff]
    %v55 = vld [vmem:[%s2] sm:$0x1]
    %v57 = vlaneseq
    %v58 = vshrl.u32 %v57, 7
    %v59 = vsub.s32 0, %v58
    %v60 = vrot.slane %v55, %v59
    %vm62 = vcmask 130048
    %v63 = vsel %vm62, %v47, 0
    %65 = vmatprep.subr.mxu0 0.0
    %66 = vmatpush1.msra.mxu0 %v53
    %67 = vmatprep.subr.mxu0 0.0
    %68 = vmatpush1.msra.mxu0 %v54
    %69 = vmatprep.subr.mxu0 0.0
    %70 = vmatpush1.msra.mxu0 0.0
    %71 = vmatprep.subr.mxu0 0.0
    %72 = vmatpush1.msra.mxu0 0.0
    %73 = vmatprep.subr.mxu0 0.0
    %74 = vmatpush1.msra.mxu0 0.0
    %75 = vmatprep.subr.mxu0 0.0
    %76 = vmatpush1.msra.mxu0 0.0
    %77 = vmatprep.subr.mxu0 0.0
    %78 = vmatpush1.msra.mxu0 0.0
    %79 = vmatprep.subr.mxu0 0.0
    %80 = vmatpush1.msra.mxu0 0.0
    %81 = vmatprep.subr.mxu0 0.0
    %82 = vmatpush1.msra.mxu0 0.0
    %83 = vmatprep.subr.mxu0 0.0
    %84 = vmatpush1.msra.mxu0 0.0
    %85 = vmatprep.subr.mxu0 0.0
    %86 = vmatpush1.msra.mxu0 0.0
    %87 = vmatprep.subr.mxu0 0.0
    %88 = vmatpush1.msra.mxu0 0.0
    %89 = vmatprep.subr.mxu0 0.0
    %90 = vmatpush1.msra.mxu0 0.0
    %91 = vmatprep.subr.mxu0 0.0
    %92 = vmatpush1.msra.mxu0 0.0
    %93 = vmatprep.subr.mxu0 0.0
    %94 = vmatpush1.msra.mxu0 0.0
    %95 = vmatprep.subr.mxu0 0.0
    %96 = vmatpush1.msra.mxu0 0.0
    %97 = vmatprep.subr.mxu0 0.0
    %98 = vmatpush1.msra.mxu0 0.0
    %99 = vmatprep.subr.mxu0 0.0
    %100 = vmatpush1.msra.mxu0 0.0
    %101 = vmatprep.subr.mxu0 0.0
    %102 = vmatpush1.msra.mxu0 0.0
    %103 = vmatprep.subr.mxu0 0.0
    %104 = vmatpush1.msra.mxu0 0.0
    %105 = vmatprep.subr.mxu0 0.0
    %106 = vmatpush1.msra.mxu0 0.0
    %107 = vmatprep.subr.mxu0 0.0
    %108 = vmatpush1.msra.mxu0 0.0
    %109 = vmatprep.subr.mxu0 0.0
    %110 = vmatpush1.msra.mxu0 0.0
    %111 = vmatprep.subr.mxu0 0.0
    %112 = vmatpush1.msra.mxu0 0.0
    %113 = vmatprep.subr.mxu0 0.0
    %114 = vmatpush1.msra.mxu0 0.0
    %115 = vmatprep.subr.mxu0 0.0
    %116 = vmatpush1.msra.mxu0 0.0
    %117 = vmatprep.subr.mxu0 0.0
    %118 = vmatpush1.msra.mxu0 0.0
    %119 = vmatprep.subr.mxu0 0.0
    %120 = vmatpush1.msra.mxu0 0.0
    %121 = vmatprep.subr.mxu0 0.0
    %122 = vmatpush1.msra.mxu0 0.0
    %123 = vmatprep.subr.mxu0 0.0
    %124 = vmatpush1.msra.mxu0 0.0
    %125 = vmatprep.subr.mxu0 0.0
    %126 = vmatpush1.msra.mxu0 0.0
    %127 = vmatprep.subr.mxu0 0.0
    %128 = vmatpush1.msra.mxu0 0.0
    %129 = vmatprep.mubr.f32.mxu0 0.0
    %130 = vmatmul.mubr.f32.gmra.mrb[0].mxu0 %v63
    %v131 = vpop.f32.mrb[0].mxu0
    %v132 = vadd.f32 %v60, %v131
    %v133 = vpop.f32.mrb[0].mxu0
    %134 = vdwg.mxu0
    %v135 = vld [vmem:[#allocation2] sm:$0xff]
    %v136 = vld [vmem:[#allocation2 + $0x8] sm:$0xff]
    %v137 = vld [vmem:[#allocation2 + $0x10] sm:$0xff]
    %v138 = vld [vmem:[#allocation2 + $0x18] sm:$0xff]
    %v139 = vld [vmem:[%s4] sm:$0x1]
    %v141 = vlaneseq
    %v142 = vshrl.u32 %v141, 7
    %v143 = vsub.s32 0, %v142
    %v144 = vrot.slane %v139, %v143
    %vm146 = vcmask 261120
    %v148 = vsel %vm146, %v132, 0
    %150 = vmatprep.subr.mxu0 0.0
    %151 = vmatpush1.msra.mxu0 %v135
    %152 = vmatprep.subr.mxu0 0.0
    %153 = vmatpush1.msra.mxu0 %v136
    %154 = vmatprep.subr.mxu0 0.0
    %155 = vmatpush1.msra.mxu0 %v137
    %156 = vmatprep.subr.mxu0 0.0
    %157 = vmatpush1.msra.mxu0 %v138
    %158 = vmatprep.subr.mxu0 0.0
    %159 = vmatpush1.msra.mxu0 0.0
    %160 = vmatprep.subr.mxu0 0.0
    %161 = vmatpush1.msra.mxu0 0.0
    %162 = vmatprep.subr.mxu0 0.0
    %163 = vmatpush1.msra.mxu0 0.0
    %164 = vmatprep.subr.mxu0 0.0
    %165 = vmatpush1.msra.mxu0 0.0
    %166 = vmatprep.subr.mxu0 0.0
    %167 = vmatpush1.msra.mxu0 0.0
    %168 = vmatprep.subr.mxu0 0.0
    %169 = vmatpush1.msra.mxu0 0.0
    %170 = vmatprep.subr.mxu0 0.0
    %171 = vmatpush1.msra.mxu0 0.0
    %172 = vmatprep.subr.mxu0 0.0
    %173 = vmatpush1.msra.mxu0 0.0
    %174 = vmatprep.subr.mxu0 0.0
    %175 = vmatpush1.msra.mxu0 0.0
    %176 = vmatprep.subr.mxu0 0.0
    %177 = vmatpush1.msra.mxu0 0.0
    %178 = vmatprep.subr.mxu0 0.0
    %179 = vmatpush1.msra.mxu0 0.0
    %180 = vmatprep.subr.mxu0 0.0
    %181 = vmatpush1.msra.mxu0 0.0
    %182 = vmatprep.subr.mxu0 0.0
    %183 = vmatpush1.msra.mxu0 0.0
    %184 = vmatprep.subr.mxu0 0.0
    %185 = vmatpush1.msra.mxu0 0.0
    %186 = vmatprep.subr.mxu0 0.0
    %187 = vmatpush1.msra.mxu0 0.0
    %188 = vmatprep.subr.mxu0 0.0
    %189 = vmatpush1.msra.mxu0 0.0
    %190 = vmatprep.subr.mxu0 0.0
    %191 = vmatpush1.msra.mxu0 0.0
    %192 = vmatprep.subr.mxu0 0.0
    %193 = vmatpush1.msra.mxu0 0.0
    %194 = vmatprep.subr.mxu0 0.0
    %195 = vmatpush1.msra.mxu0 0.0
    %196 = vmatprep.subr.mxu0 0.0
    %197 = vmatpush1.msra.mxu0 0.0
    %198 = vmatprep.subr.mxu0 0.0
    %199 = vmatpush1.msra.mxu0 0.0
    %200 = vmatprep.subr.mxu0 0.0
    %201 = vmatpush1.msra.mxu0 0.0
    %202 = vmatprep.subr.mxu0 0.0
    %203 = vmatpush1.msra.mxu0 0.0
    %204 = vmatprep.subr.mxu0 0.0
    %205 = vmatpush1.msra.mxu0 0.0
    %206 = vmatprep.subr.mxu0 0.0
    %207 = vmatpush1.msra.mxu0 0.0
    %208 = vmatprep.subr.mxu0 0.0
    %209 = vmatpush1.msra.mxu0 0.0
    %210 = vmatprep.subr.mxu0 0.0
    %211 = vmatpush1.msra.mxu0 0.0
    %212 = vmatprep.subr.mxu0 0.0
    %213 = vmatpush1.msra.mxu0 0.0
    %214 = vmatprep.mubr.f32.mxu0 0.0
    %215 = vmatmul.mubr.f32.gmra.mrb[0].mxu0 %v148
    %v216 = vpop.f32.mrb[0].mxu0
    %v217 = vadd.f32 %v144, %v216
    %v218 = vpop.f32.mrb[0].mxu0
    %219 = vdwg.mxu0
    %v220 = vmax.f32 %v217, 0.0
    %s221 = scalar_lea.vmem [#allocation2], 32
    %v222 = vld [vmem:[%s221] sm:$0xff]
    %v223 = vld [vmem:[%s221 + $0x8] sm:$0xff]
    %v224 = vld [vmem:[%s221 + $0x10] sm:$0xff]
    %v225 = vld [vmem:[%s221 + $0x18] sm:$0xff]
    %s226 = scalar_lea.vmem %s4, 1
    %v227 = vld [vmem:[%s226] sm:$0x1]
    %v229 = vlaneseq
    %v230 = vshrl.u32 %v229, 7
    %v231 = vsub.s32 0, %v230
    %v232 = vrot.slane %v227, %v231
    %v235 = vsel %vm146, %v220, 0
    %237 = vmatprep.subr.mxu0 0.0
    %238 = vmatpush1.msra.mxu0 %v222
    %239 = vmatprep.subr.mxu0 0.0
    %240 = vmatpush1.msra.mxu0 %v223
    %241 = vmatprep.subr.mxu0 0.0
    %242 = vmatpush1.msra.mxu0 %v224
    %243 = vmatprep.subr.mxu0 0.0
    %244 = vmatpush1.msra.mxu0 %v225
    %245 = vmatprep.subr.mxu0 0.0
    %246 = vmatpush1.msra.mxu0 0.0
    %247 = vmatprep.subr.mxu0 0.0
    %248 = vmatpush1.msra.mxu0 0.0
    %249 = vmatprep.subr.mxu0 0.0
    %250 = vmatpush1.msra.mxu0 0.0
    %251 = vmatprep.subr.mxu0 0.0
    %252 = vmatpush1.msra.mxu0 0.0
    %253 = vmatprep.subr.mxu0 0.0
    %254 = vmatpush1.msra.mxu0 0.0
    %255 = vmatprep.subr.mxu0 0.0
    %256 = vmatpush1.msra.mxu0 0.0
    %257 = vmatprep.subr.mxu0 0.0
    %258 = vmatpush1.msra.mxu0 0.0
    %259 = vmatprep.subr.mxu0 0.0
    %260 = vmatpush1.msra.mxu0 0.0
    %261 = vmatprep.subr.mxu0 0.0
    %262 = vmatpush1.msra.mxu0 0.0
    %263 = vmatprep.subr.mxu0 0.0
    %264 = vmatpush1.msra.mxu0 0.0
    %265 = vmatprep.subr.mxu0 0.0
    %266 = vmatpush1.msra.mxu0 0.0
    %267 = vmatprep.subr.mxu0 0.0
    %268 = vmatpush1.msra.mxu0 0.0
    %269 = vmatprep.subr.mxu0 0.0
    %270 = vmatpush1.msra.mxu0 0.0
    %271 = vmatprep.subr.mxu0 0.0
    %272 = vmatpush1.msra.mxu0 0.0
    %273 = vmatprep.subr.mxu0 0.0
    %274 = vmatpush1.msra.mxu0 0.0
    %275 = vmatprep.subr.mxu0 0.0
    %276 = vmatpush1.msra.mxu0 0.0
    %277 = vmatprep.subr.mxu0 0.0
    %278 = vmatpush1.msra.mxu0 0.0
    %279 = vmatprep.subr.mxu0 0.0
    %280 = vmatpush1.msra.mxu0 0.0
    %281 = vmatprep.subr.mxu0 0.0
    %282 = vmatpush1.msra.mxu0 0.0
    %283 = vmatprep.subr.mxu0 0.0
    %284 = vmatpush1.msra.mxu0 0.0
    %285 = vmatprep.subr.mxu0 0.0
    %286 = vmatpush1.msra.mxu0 0.0
    %287 = vmatprep.subr.mxu0 0.0
    %288 = vmatpush1.msra.mxu0 0.0
    %289 = vmatprep.subr.mxu0 0.0
    %290 = vmatpush1.msra.mxu0 0.0
    %291 = vmatprep.subr.mxu0 0.0
    %292 = vmatpush1.msra.mxu0 0.0
    %293 = vmatprep.subr.mxu0 0.0
    %294 = vmatpush1.msra.mxu0 0.0
    %295 = vmatprep.subr.mxu0 0.0
    %296 = vmatpush1.msra.mxu0 0.0
    %297 = vmatprep.subr.mxu0 0.0
    %298 = vmatpush1.msra.mxu0 0.0
    %299 = vmatprep.subr.mxu0 0.0
    %300 = vmatpush1.msra.mxu0 0.0
    %301 = vmatprep.mubr.f32.mxu0 0.0
    %302 = vmatmul.mubr.f32.gmra.mrb[0].mxu0 %v235
    %v303 = vpop.f32.mrb[0].mxu0
    %v304 = vadd.f32 %v232, %v303
    %v305 = vpop.f32.mrb[0].mxu0
    %306 = vdwg.mxu0
    %v307 = vmax.f32 %v304, 0.0
    %s308 = scalar_lea.vmem [#allocation2], 64
    %v309 = vld [vmem:[%s308] sm:$0xff]
    %v310 = vld [vmem:[%s308 + $0x8] sm:$0xff]
    %v311 = vld [vmem:[%s308 + $0x10] sm:$0xff]
    %v312 = vld [vmem:[%s308 + $0x18] sm:$0xff]
    %s313 = scalar_lea.vmem %s4, 2
    %v314 = vld [vmem:[%s313] sm:$0x1]
    %v316 = vlaneseq
    %v317 = vshrl.u32 %v316, 7
    %v318 = vsub.s32 0, %v317
    %v319 = vrot.slane %v314, %v318
    %v322 = vsel %vm146, %v307, 0
    %324 = vmatprep.subr.mxu0 0.0
    %325 = vmatpush1.msra.mxu0 %v309
    %326 = vmatprep.subr.mxu0 0.0
    %327 = vmatpush1.msra.mxu0 %v310
    %328 = vmatprep.subr.mxu0 0.0
    %329 = vmatpush1.msra.mxu0 %v311
    %330 = vmatprep.subr.mxu0 0.0
    %331 = vmatpush1.msra.mxu0 %v312
    %332 = vmatprep.subr.mxu0 0.0
    %333 = vmatpush1.msra.mxu0 0.0
    %334 = vmatprep.subr.mxu0 0.0
    %335 = vmatpush1.msra.mxu0 0.0
    %336 = vmatprep.subr.mxu0 0.0
    %337 = vmatpush1.msra.mxu0 0.0
    %338 = vmatprep.subr.mxu0 0.0
    %339 = vmatpush1.msra.mxu0 0.0
    %340 = vmatprep.subr.mxu0 0.0
    %341 = vmatpush1.msra.mxu0 0.0
    %342 = vmatprep.subr.mxu0 0.0
    %343 = vmatpush1.msra.mxu0 0.0
    %344 = vmatprep.subr.mxu0 0.0
    %345 = vmatpush1.msra.mxu0 0.0
    %346 = vmatprep.subr.mxu0 0.0
    %347 = vmatpush1.msra.mxu0 0.0
    %348 = vmatprep.subr.mxu0 0.0
    %349 = vmatpush1.msra.mxu0 0.0
    %350 = vmatprep.subr.mxu0 0.0
    %351 = vmatpush1.msra.mxu0 0.0
    %352 = vmatprep.subr.mxu0 0.0
    %353 = vmatpush1.msra.mxu0 0.0
    %354 = vmatprep.subr.mxu0 0.0
    %355 = vmatpush1.msra.mxu0 0.0
    %356 = vmatprep.subr.mxu0 0.0
    %357 = vmatpush1.msra.mxu0 0.0
    %358 = vmatprep.subr.mxu0 0.0
    %359 = vmatpush1.msra.mxu0 0.0
    %360 = vmatprep.subr.mxu0 0.0
    %361 = vmatpush1.msra.mxu0 0.0
    %362 = vmatprep.subr.mxu0 0.0
    %363 = vmatpush1.msra.mxu0 0.0
    %364 = vmatprep.subr.mxu0 0.0
    %365 = vmatpush1.msra.mxu0 0.0
    %366 = vmatprep.subr.mxu0 0.0
    %367 = vmatpush1.msra.mxu0 0.0
    %368 = vmatprep.subr.mxu0 0.0
    %369 = vmatpush1.msra.mxu0 0.0
    %370 = vmatprep.subr.mxu0 0.0
    %371 = vmatpush1.msra.mxu0 0.0
    %372 = vmatprep.subr.mxu0 0.0
    %373 = vmatpush1.msra.mxu0 0.0
    %374 = vmatprep.subr.mxu0 0.0
    %375 = vmatpush1.msra.mxu0 0.0
    %376 = vmatprep.subr.mxu0 0.0
    %377 = vmatpush1.msra.mxu0 0.0
    %378 = vmatprep.subr.mxu0 0.0
    %379 = vmatpush1.msra.mxu0 0.0
    %380 = vmatprep.subr.mxu0 0.0
    %381 = vmatpush1.msra.mxu0 0.0
    %382 = vmatprep.subr.mxu0 0.0
    %383 = vmatpush1.msra.mxu0 0.0
    %384 = vmatprep.subr.mxu0 0.0
    %385 = vmatpush1.msra.mxu0 0.0
    %386 = vmatprep.subr.mxu0 0.0
    %387 = vmatpush1.msra.mxu0 0.0
    %388 = vmatprep.mubr.f32.mxu0 0.0
    %389 = vmatmul.mubr.f32.gmra.mrb[0].mxu0 %v322
    %v390 = vpop.f32.mrb[0].mxu0
    %v391 = vadd.f32 %v319, %v390
    %v392 = vpop.f32.mrb[0].mxu0
    %393 = vdwg.mxu0
    %v394 = vmax.f32 %v391, 0.0
    %v395 = vld [vmem:[%s5] sm:$0xff]
    %v396 = vld [vmem:[%s5 + $0x8] sm:$0xff]
    %v397 = vld [vmem:[%s5 + $0x10] sm:$0xff]
    %v398 = vld [vmem:[%s5 + $0x18] sm:$0xff]
    %v399 = vld [vmem:[%s6] sm:$0x1]
    %v401 = vlaneseq
    %v402 = vshrl.u32 %v401, 7
    %v403 = vsub.s32 0, %v402
    %v404 = vrot.slane %v399, %v403
    %v407 = vsel %vm146, %v394, 0
    %409 = vmatprep.subr.mxu0 0.0
    %410 = vmatpush1.msra.mxu0 %v395
    %411 = vmatprep.subr.mxu0 0.0
    %412 = vmatpush1.msra.mxu0 %v396
    %413 = vmatprep.subr.mxu0 0.0
    %414 = vmatpush1.msra.mxu0 %v397
    %415 = vmatprep.subr.mxu0 0.0
    %416 = vmatpush1.msra.mxu0 %v398
    %417 = vmatprep.subr.mxu0 0.0
    %418 = vmatpush1.msra.mxu0 0.0
    %419 = vmatprep.subr.mxu0 0.0
    %420 = vmatpush1.msra.mxu0 0.0
    %421 = vmatprep.subr.mxu0 0.0
    %422 = vmatpush1.msra.mxu0 0.0
    %423 = vmatprep.subr.mxu0 0.0
    %424 = vmatpush1.msra.mxu0 0.0
    %425 = vmatprep.subr.mxu0 0.0
    %426 = vmatpush1.msra.mxu0 0.0
    %427 = vmatprep.subr.mxu0 0.0
    %428 = vmatpush1.msra.mxu0 0.0
    %429 = vmatprep.subr.mxu0 0.0
    %430 = vmatpush1.msra.mxu0 0.0
    %431 = vmatprep.subr.mxu0 0.0
    %432 = vmatpush1.msra.mxu0 0.0
    %433 = vmatprep.subr.mxu0 0.0
    %434 = vmatpush1.msra.mxu0 0.0
    %435 = vmatprep.subr.mxu0 0.0
    %436 = vmatpush1.msra.mxu0 0.0
    %437 = vmatprep.subr.mxu0 0.0
    %438 = vmatpush1.msra.mxu0 0.0
    %439 = vmatprep.subr.mxu0 0.0
    %440 = vmatpush1.msra.mxu0 0.0
    %441 = vmatprep.subr.mxu0 0.0
    %442 = vmatpush1.msra.mxu0 0.0
    %443 = vmatprep.subr.mxu0 0.0
    %444 = vmatpush1.msra.mxu0 0.0
    %445 = vmatprep.subr.mxu0 0.0
    %446 = vmatpush1.msra.mxu0 0.0
    %447 = vmatprep.subr.mxu0 0.0
    %448 = vmatpush1.msra.mxu0 0.0
    %449 = vmatprep.subr.mxu0 0.0
    %450 = vmatpush1.msra.mxu0 0.0
    %451 = vmatprep.subr.mxu0 0.0
    %452 = vmatpush1.msra.mxu0 0.0
    %453 = vmatprep.subr.mxu0 0.0
    %454 = vmatpush1.msra.mxu0 0.0
    %455 = vmatprep.subr.mxu0 0.0
    %456 = vmatpush1.msra.mxu0 0.0
    %457 = vmatprep.subr.mxu0 0.0
    %458 = vmatpush1.msra.mxu0 0.0
    %459 = vmatprep.subr.mxu0 0.0
    %460 = vmatpush1.msra.mxu0 0.0
    %461 = vmatprep.subr.mxu0 0.0
    %462 = vmatpush1.msra.mxu0 0.0
    %463 = vmatprep.subr.mxu0 0.0
    %464 = vmatpush1.msra.mxu0 0.0
    %465 = vmatprep.subr.mxu0 0.0
    %466 = vmatpush1.msra.mxu0 0.0
    %467 = vmatprep.subr.mxu0 0.0
    %468 = vmatpush1.msra.mxu0 0.0
    %469 = vmatprep.subr.mxu0 0.0
    %470 = vmatpush1.msra.mxu0 0.0
    %471 = vmatprep.subr.mxu0 0.0
    %472 = vmatpush1.msra.mxu0 0.0
    %473 = vmatprep.mubr.f32.mxu0 0.0
    %474 = vmatmul.mubr.f32.gmra.mrb[0].mxu0 %v407
    %v475 = vpop.f32.mrb[0].mxu0
    %v476 = vadd.f32 %v404, %v475
    %v477 = vpop.f32.mrb[0].mxu0
    %478 = vdwg.mxu0
    %v479 = vld [vmem:[%s7] sm:$0xff]
    %v480 = vld [vmem:[%s7 + $0x8] sm:$0xff]
    %v481 = vld [vmem:[%s7 + $0x10] sm:$0xff]
    %v482 = vld [vmem:[%s7 + $0x18] sm:$0xff]
    %v483 = vld [vmem:[%s8] sm:$0x1]
    %v485 = vlaneseq
    %v486 = vshrl.u32 %v485, 7
    %v487 = vsub.s32 0, %v486
    %v488 = vrot.slane %v483, %v487
    %490 = vmatprep.subr.mxu0 0.0
    %491 = vmatpush1.msra.mxu0 %v479
    %492 = vmatprep.subr.mxu0 0.0
    %493 = vmatpush1.msra.mxu0 %v480
    %494 = vmatprep.subr.mxu0 0.0
    %495 = vmatpush1.msra.mxu0 %v481
    %496 = vmatprep.subr.mxu0 0.0
    %497 = vmatpush1.msra.mxu0 %v482
    %498 = vmatprep.subr.mxu0 0.0
    %499 = vmatpush1.msra.mxu0 0.0
    %500 = vmatprep.subr.mxu0 0.0
    %501 = vmatpush1.msra.mxu0 0.0
    %502 = vmatprep.subr.mxu0 0.0
    %503 = vmatpush1.msra.mxu0 0.0
    %504 = vmatprep.subr.mxu0 0.0
    %505 = vmatpush1.msra.mxu0 0.0
    %506 = vmatprep.subr.mxu0 0.0
    %507 = vmatpush1.msra.mxu0 0.0
    %508 = vmatprep.subr.mxu0 0.0
    %509 = vmatpush1.msra.mxu0 0.0
    %510 = vmatprep.subr.mxu0 0.0
    %511 = vmatpush1.msra.mxu0 0.0
    %512 = vmatprep.subr.mxu0 0.0
    %513 = vmatpush1.msra.mxu0 0.0
    %514 = vmatprep.subr.mxu0 0.0
    %515 = vmatpush1.msra.mxu0 0.0
    %516 = vmatprep.subr.mxu0 0.0
    %517 = vmatpush1.msra.mxu0 0.0
    %518 = vmatprep.subr.mxu0 0.0
    %519 = vmatpush1.msra.mxu0 0.0
    %520 = vmatprep.subr.mxu0 0.0
    %521 = vmatpush1.msra.mxu0 0.0
    %522 = vmatprep.subr.mxu0 0.0
    %523 = vmatpush1.msra.mxu0 0.0
    %524 = vmatprep.subr.mxu0 0.0
    %525 = vmatpush1.msra.mxu0 0.0
    %526 = vmatprep.subr.mxu0 0.0
    %527 = vmatpush1.msra.mxu0 0.0
    %528 = vmatprep.subr.mxu0 0.0
    %529 = vmatpush1.msra.mxu0 0.0
    %530 = vmatprep.subr.mxu0 0.0
    %531 = vmatpush1.msra.mxu0 0.0
    %532 = vmatprep.subr.mxu0 0.0
    %533 = vmatpush1.msra.mxu0 0.0
    %534 = vmatprep.subr.mxu0 0.0
    %535 = vmatpush1.msra.mxu0 0.0
    %536 = vmatprep.subr.mxu0 0.0
    %537 = vmatpush1.msra.mxu0 0.0
    %538 = vmatprep.subr.mxu0 0.0
    %539 = vmatpush1.msra.mxu0 0.0
    %540 = vmatprep.subr.mxu0 0.0
    %541 = vmatpush1.msra.mxu0 0.0
    %542 = vmatprep.subr.mxu0 0.0
    %543 = vmatpush1.msra.mxu0 0.0
    %544 = vmatprep.subr.mxu0 0.0
    %545 = vmatpush1.msra.mxu0 0.0
    %546 = vmatprep.subr.mxu0 0.0
    %547 = vmatpush1.msra.mxu0 0.0
    %548 = vmatprep.subr.mxu0 0.0
    %549 = vmatpush1.msra.mxu0 0.0
    %550 = vmatprep.subr.mxu0 0.0
    %551 = vmatpush1.msra.mxu0 0.0
    %552 = vmatprep.subr.mxu0 0.0
    %553 = vmatpush1.msra.mxu0 0.0
    %554 = vmatprep.mubr.f32.mxu0 0.0
    %555 = vmatmul.mubr.f32.gmra.mrb[0].mxu0 %v407
    %v556 = vpop.f32.mrb[0].mxu0
    %v557 = vadd.f32 %v488, %v556
    %v558 = vpop.f32.mrb[0].mxu0
    %559 = vdwg.mxu0
    %v560 = vadd.f32 %v51, %v557
    %v561 = vsub.f32 %v47, %v476
    %s562 = scalar_lea.vmem %s1, 16
    %v563 = vld [vmem:[%s562] sm:$0xff]
    %v564 = vld [vmem:[%s562 + $0x8] sm:$0xff]
    %s565 = scalar_lea.vmem %s2, 1
    %v566 = vld [vmem:[%s565] sm:$0x1]
    %v568 = vlaneseq
    %v569 = vshrl.u32 %v568, 7
    %v570 = vsub.s32 0, %v569
    %v571 = vrot.slane %v566, %v570
    %v574 = vsel %vm62, %v561, 0
    %576 = vmatprep.subr.mxu0 0.0
    %577 = vmatpush1.msra.mxu0 %v563
    %578 = vmatprep.subr.mxu0 0.0
    %579 = vmatpush1.msra.mxu0 %v564
    %580 = vmatprep.subr.mxu0 0.0
    %581 = vmatpush1.msra.mxu0 0.0
    %582 = vmatprep.subr.mxu0 0.0
    %583 = vmatpush1.msra.mxu0 0.0
    %584 = vmatprep.subr.mxu0 0.0
    %585 = vmatpush1.msra.mxu0 0.0
    %586 = vmatprep.subr.mxu0 0.0
    %587 = vmatpush1.msra.mxu0 0.0
    %588 = vmatprep.subr.mxu0 0.0
    %589 = vmatpush1.msra.mxu0 0.0
    %590 = vmatprep.subr.mxu0 0.0
    %591 = vmatpush1.msra.mxu0 0.0
    %592 = vmatprep.subr.mxu0 0.0
    %593 = vmatpush1.msra.mxu0 0.0
    %594 = vmatprep.subr.mxu0 0.0
    %595 = vmatpush1.msra.mxu0 0.0
    %596 = vmatprep.subr.mxu0 0.0
    %597 = vmatpush1.msra.mxu0 0.0
    %598 = vmatprep.subr.mxu0 0.0
    %599 = vmatpush1.msra.mxu0 0.0
    %600 = vmatprep.subr.mxu0 0.0
    %601 = vmatpush1.msra.mxu0 0.0
    %602 = vmatprep.subr.mxu0 0.0
    %603 = vmatpush1.msra.mxu0 0.0
    %604 = vmatprep.subr.mxu0 0.0
    %605 = vmatpush1.msra.mxu0 0.0
    %606 = vmatprep.subr.mxu0 0.0
    %607 = vmatpush1.msra.mxu0 0.0
    %608 = vmatprep.subr.mxu0 0.0
    %609 = vmatpush1.msra.mxu0 0.0
    %610 = vmatprep.subr.mxu0 0.0
    %611 = vmatpush1.msra.mxu0 0.0
    %612 = vmatprep.subr.mxu0 0.0
    %613 = vmatpush1.msra.mxu0 0.0
    %614 = vmatprep.subr.mxu0 0.0
    %615 = vmatpush1.msra.mxu0 0.0
    %616 = vmatprep.subr.mxu0 0.0
    %617 = vmatpush1.msra.mxu0 0.0
    %618 = vmatprep.subr.mxu0 0.0
    %619 = vmatpush1.msra.mxu0 0.0
    %620 = vmatprep.subr.mxu0 0.0
    %621 = vmatpush1.msra.mxu0 0.0
    %622 = vmatprep.subr.mxu0 0.0
    %623 = vmatpush1.msra.mxu0 0.0
    %624 = vmatprep.subr.mxu0 0.0
    %625 = vmatpush1.msra.mxu0 0.0
    %626 = vmatprep.subr.mxu0 0.0
    %627 = vmatpush1.msra.mxu0 0.0
    %628 = vmatprep.subr.mxu0 0.0
    %629 = vmatpush1.msra.mxu0 0.0
    %630 = vmatprep.subr.mxu0 0.0
    %631 = vmatpush1.msra.mxu0 0.0
    %632 = vmatprep.subr.mxu0 0.0
    %633 = vmatpush1.msra.mxu0 0.0
    %634 = vmatprep.subr.mxu0 0.0
    %635 = vmatpush1.msra.mxu0 0.0
    %636 = vmatprep.subr.mxu0 0.0
    %637 = vmatpush1.msra.mxu0 0.0
    %638 = vmatprep.subr.mxu0 0.0
    %639 = vmatpush1.msra.mxu0 0.0
    %640 = vmatprep.mubr.f32.mxu0 0.0
    %641 = vmatmul.mubr.f32.gmra.mrb[0].mxu0 %v574
    %v642 = vpop.f32.mrb[0].mxu0
    %v643 = vadd.f32 %v571, %v642
    %v644 = vpop.f32.mrb[0].mxu0
    %645 = vdwg.mxu0
    %s646 = scalar_lea.vmem [#allocation2], 96
    %v647 = vld [vmem:[%s646] sm:$0xff]
    %v648 = vld [vmem:[%s646 + $0x8] sm:$0xff]
    %v649 = vld [vmem:[%s646 + $0x10] sm:$0xff]
    %v650 = vld [vmem:[%s646 + $0x18] sm:$0xff]
    %s651 = scalar_lea.vmem %s4, 3
    %v652 = vld [vmem:[%s651] sm:$0x1]
    %v654 = vlaneseq
    %v655 = vshrl.u32 %v654, 7
    %v656 = vsub.s32 0, %v655
    %v657 = vrot.slane %v652, %v656
    %v660 = vsel %vm146, %v643, 0
    %662 = vmatprep.subr.mxu0 0.0
    %663 = vmatpush1.msra.mxu0 %v647
    %664 = vmatprep.subr.mxu0 0.0
    %665 = vmatpush1.msra.mxu0 %v648
    %666 = vmatprep.subr.mxu0 0.0
    %667 = vmatpush1.msra.mxu0 %v649
    %668 = vmatprep.subr.mxu0 0.0
    %669 = vmatpush1.msra.mxu0 %v650
    %670 = vmatprep.subr.mxu0 0.0
    %671 = vmatpush1.msra.mxu0 0.0
    %672 = vmatprep.subr.mxu0 0.0
    %673 = vmatpush1.msra.mxu0 0.0
    %674 = vmatprep.subr.mxu0 0.0
    %675 = vmatpush1.msra.mxu0 0.0
    %676 = vmatprep.subr.mxu0 0.0
    %677 = vmatpush1.msra.mxu0 0.0
    %678 = vmatprep.subr.mxu0 0.0
    %679 = vmatpush1.msra.mxu0 0.0
    %680 = vmatprep.subr.mxu0 0.0
    %681 = vmatpush1.msra.mxu0 0.0
    %682 = vmatprep.subr.mxu0 0.0
    %683 = vmatpush1.msra.mxu0 0.0
    %684 = vmatprep.subr.mxu0 0.0
    %685 = vmatpush1.msra.mxu0 0.0
    %686 = vmatprep.subr.mxu0 0.0
    %687 = vmatpush1.msra.mxu0 0.0
    %688 = vmatprep.subr.mxu0 0.0
    %689 = vmatpush1.msra.mxu0 0.0
    %690 = vmatprep.subr.mxu0 0.0
    %691 = vmatpush1.msra.mxu0 0.0
    %692 = vmatprep.subr.mxu0 0.0
    %693 = vmatpush1.msra.mxu0 0.0
    %694 = vmatprep.subr.mxu0 0.0
    %695 = vmatpush1.msra.mxu0 0.0
    %696 = vmatprep.subr.mxu0 0.0
    %697 = vmatpush1.msra.mxu0 0.0
    %698 = vmatprep.subr.mxu0 0.0
    %699 = vmatpush1.msra.mxu0 0.0
    %700 = vmatprep.subr.mxu0 0.0
    %701 = vmatpush1.msra.mxu0 0.0
    %702 = vmatprep.subr.mxu0 0.0
    %703 = vmatpush1.msra.mxu0 0.0
    %704 = vmatprep.subr.mxu0 0.0
    %705 = vmatpush1.msra.mxu0 0.0
    %706 = vmatprep.subr.mxu0 0.0
    %707 = vmatpush1.msra.mxu0 0.0
    %708 = vmatprep.subr.mxu0 0.0
    %709 = vmatpush1.msra.mxu0 0.0
    %710 = vmatprep.subr.mxu0 0.0
    %711 = vmatpush1.msra.mxu0 0.0
    %712 = vmatprep.subr.mxu0 0.0
    %713 = vmatpush1.msra.mxu0 0.0
    %714 = vmatprep.subr.mxu0 0.0
    %715 = vmatpush1.msra.mxu0 0.0
    %716 = vmatprep.subr.mxu0 0.0
    %717 = vmatpush1.msra.mxu0 0.0
    %718 = vmatprep.subr.mxu0 0.0
    %719 = vmatpush1.msra.mxu0 0.0
    %720 = vmatprep.subr.mxu0 0.0
    %721 = vmatpush1.msra.mxu0 0.0
    %722 = vmatprep.subr.mxu0 0.0
    %723 = vmatpush1.msra.mxu0 0.0
    %724 = vmatprep.subr.mxu0 0.0
    %725 = vmatpush1.msra.mxu0 0.0
    %726 = vmatprep.mubr.f32.mxu0 0.0
    %727 = vmatmul.mubr.f32.gmra.mrb[0].mxu0 %v660
    %v728 = vpop.f32.mrb[0].mxu0
    %v729 = vadd.f32 %v657, %v728
    %v730 = vpop.f32.mrb[0].mxu0
    %731 = vdwg.mxu0
    %v732 = vmax.f32 %v729, 0.0
    %s733 = scalar_lea.vmem [#allocation2], 128
    %v734 = vld [vmem:[%s733] sm:$0xff]
    %v735 = vld [vmem:[%s733 + $0x8] sm:$0xff]
    %v736 = vld [vmem:[%s733 + $0x10] sm:$0xff]
    %v737 = vld [vmem:[%s733 + $0x18] sm:$0xff]
    %s738 = scalar_lea.vmem %s4, 4
    %v739 = vld [vmem:[%s738] sm:$0x1]
    %v741 = vlaneseq
    %v742 = vshrl.u32 %v741, 7
    %v743 = vsub.s32 0, %v742
    %v744 = vrot.slane %v739, %v743
    %v747 = vsel %vm146, %v732, 0
    %749 = vmatprep.subr.mxu0 0.0
    %750 = vmatpush1.msra.mxu0 %v734
    %751 = vmatprep.subr.mxu0 0.0
    %752 = vmatpush1.msra.mxu0 %v735
    %753 = vmatprep.subr.mxu0 0.0
    %754 = vmatpush1.msra.mxu0 %v736
    %755 = vmatprep.subr.mxu0 0.0
    %756 = vmatpush1.msra.mxu0 %v737
    %757 = vmatprep.subr.mxu0 0.0
    %758 = vmatpush1.msra.mxu0 0.0
    %759 = vmatprep.subr.mxu0 0.0
    %760 = vmatpush1.msra.mxu0 0.0
    %761 = vmatprep.subr.mxu0 0.0
    %762 = vmatpush1.msra.mxu0 0.0
    %763 = vmatprep.subr.mxu0 0.0
    %764 = vmatpush1.msra.mxu0 0.0
    %765 = vmatprep.subr.mxu0 0.0
    %766 = vmatpush1.msra.mxu0 0.0
    %767 = vmatprep.subr.mxu0 0.0
    %768 = vmatpush1.msra.mxu0 0.0
    %769 = vmatprep.subr.mxu0 0.0
    %770 = vmatpush1.msra.mxu0 0.0
    %771 = vmatprep.subr.mxu0 0.0
    %772 = vmatpush1.msra.mxu0 0.0
    %773 = vmatprep.subr.mxu0 0.0
    %774 = vmatpush1.msra.mxu0 0.0
    %775 = vmatprep.subr.mxu0 0.0
    %776 = vmatpush1.msra.mxu0 0.0
    %777 = vmatprep.subr.mxu0 0.0
    %778 = vmatpush1.msra.mxu0 0.0
    %779 = vmatprep.subr.mxu0 0.0
    %780 = vmatpush1.msra.mxu0 0.0
    %781 = vmatprep.subr.mxu0 0.0
    %782 = vmatpush1.msra.mxu0 0.0
    %783 = vmatprep.subr.mxu0 0.0
    %784 = vmatpush1.msra.mxu0 0.0
    %785 = vmatprep.subr.mxu0 0.0
    %786 = vmatpush1.msra.mxu0 0.0
    %787 = vmatprep.subr.mxu0 0.0
    %788 = vmatpush1.msra.mxu0 0.0
    %789 = vmatprep.subr.mxu0 0.0
    %790 = vmatpush1.msra.mxu0 0.0
    %791 = vmatprep.subr.mxu0 0.0
    %792 = vmatpush1.msra.mxu0 0.0
    %793 = vmatprep.subr.mxu0 0.0
    %794 = vmatpush1.msra.mxu0 0.0
    %795 = vmatprep.subr.mxu0 0.0
    %796 = vmatpush1.msra.mxu0 0.0
    %797 = vmatprep.subr.mxu0 0.0
    %798 = vmatpush1.msra.mxu0 0.0
    %799 = vmatprep.subr.mxu0 0.0
    %800 = vmatpush1.msra.mxu0 0.0
    %801 = vmatprep.subr.mxu0 0.0
    %802 = vmatpush1.msra.mxu0 0.0
    %803 = vmatprep.subr.mxu0 0.0
    %804 = vmatpush1.msra.mxu0 0.0
    %805 = vmatprep.subr.mxu0 0.0
    %806 = vmatpush1.msra.mxu0 0.0
    %807 = vmatprep.subr.mxu0 0.0
    %808 = vmatpush1.msra.mxu0 0.0
    %809 = vmatprep.subr.mxu0 0.0
    %810 = vmatpush1.msra.mxu0 0.0
    %811 = vmatprep.subr.mxu0 0.0
    %812 = vmatpush1.msra.mxu0 0.0
    %813 = vmatprep.mubr.f32.mxu0 0.0
    %814 = vmatmul.mubr.f32.gmra.mrb[0].mxu0 %v747
    %v815 = vpop.f32.mrb[0].mxu0
    %v816 = vadd.f32 %v744, %v815
    %v817 = vpop.f32.mrb[0].mxu0
    %818 = vdwg.mxu0
    %v819 = vmax.f32 %v816, 0.0
    %s820 = scalar_lea.vmem [#allocation2], 160
    %v821 = vld [vmem:[%s820] sm:$0xff]
    %v822 = vld [vmem:[%s820 + $0x8] sm:$0xff]
    %v823 = vld [vmem:[%s820 + $0x10] sm:$0xff]
    %v824 = vld [vmem:[%s820 + $0x18] sm:$0xff]
    %s825 = scalar_lea.vmem %s4, 5
    %v826 = vld [vmem:[%s825] sm:$0x1]
    %v828 = vlaneseq
    %v829 = vshrl.u32 %v828, 7
    %v830 = vsub.s32 0, %v829
    %v831 = vrot.slane %v826, %v830
    %v834 = vsel %vm146, %v819, 0
    %836 = vmatprep.subr.mxu0 0.0
    %837 = vmatpush1.msra.mxu0 %v821
    %838 = vmatprep.subr.mxu0 0.0
    %839 = vmatpush1.msra.mxu0 %v822
    %840 = vmatprep.subr.mxu0 0.0
    %841 = vmatpush1.msra.mxu0 %v823
    %842 = vmatprep.subr.mxu0 0.0
    %843 = vmatpush1.msra.mxu0 %v824
    %844 = vmatprep.subr.mxu0 0.0
    %845 = vmatpush1.msra.mxu0 0.0
    %846 = vmatprep.subr.mxu0 0.0
    %847 = vmatpush1.msra.mxu0 0.0
    %848 = vmatprep.subr.mxu0 0.0
    %849 = vmatpush1.msra.mxu0 0.0
    %850 = vmatprep.subr.mxu0 0.0
    %851 = vmatpush1.msra.mxu0 0.0
    %852 = vmatprep.subr.mxu0 0.0
    %853 = vmatpush1.msra.mxu0 0.0
    %854 = vmatprep.subr.mxu0 0.0
    %855 = vmatpush1.msra.mxu0 0.0
    %856 = vmatprep.subr.mxu0 0.0
    %857 = vmatpush1.msra.mxu0 0.0
    %858 = vmatprep.subr.mxu0 0.0
    %859 = vmatpush1.msra.mxu0 0.0
    %860 = vmatprep.subr.mxu0 0.0
    %861 = vmatpush1.msra.mxu0 0.0
    %862 = vmatprep.subr.mxu0 0.0
    %863 = vmatpush1.msra.mxu0 0.0
    %864 = vmatprep.subr.mxu0 0.0
    %865 = vmatpush1.msra.mxu0 0.0
    %866 = vmatprep.subr.mxu0 0.0
    %867 = vmatpush1.msra.mxu0 0.0
    %868 = vmatprep.subr.mxu0 0.0
    %869 = vmatpush1.msra.mxu0 0.0
    %870 = vmatprep.subr.mxu0 0.0
    %871 = vmatpush1.msra.mxu0 0.0
    %872 = vmatprep.subr.mxu0 0.0
    %873 = vmatpush1.msra.mxu0 0.0
    %874 = vmatprep.subr.mxu0 0.0
    %875 = vmatpush1.msra.mxu0 0.0
    %876 = vmatprep.subr.mxu0 0.0
    %877 = vmatpush1.msra.mxu0 0.0
    %878 = vmatprep.subr.mxu0 0.0
    %879 = vmatpush1.msra.mxu0 0.0
    %880 = vmatprep.subr.mxu0 0.0
    %881 = vmatpush1.msra.mxu0 0.0
    %882 = vmatprep.subr.mxu0 0.0
    %883 = vmatpush1.msra.mxu0 0.0
    %884 = vmatprep.subr.mxu0 0.0
    %885 = vmatpush1.msra.mxu0 0.0
    %886 = vmatprep.subr.mxu0 0.0
    %887 = vmatpush1.msra.mxu0 0.0
    %888 = vmatprep.subr.mxu0 0.0
    %889 = vmatpush1.msra.mxu0 0.0
    %890 = vmatprep.subr.mxu0 0.0
    %891 = vmatpush1.msra.mxu0 0.0
    %892 = vmatprep.subr.mxu0 0.0
    %893 = vmatpush1.msra.mxu0 0.0
    %894 = vmatprep.subr.mxu0 0.0
    %895 = vmatpush1.msra.mxu0 0.0
    %896 = vmatprep.subr.mxu0 0.0
    %897 = vmatpush1.msra.mxu0 0.0
    %898 = vmatprep.subr.mxu0 0.0
    %899 = vmatpush1.msra.mxu0 0.0
    %900 = vmatprep.mubr.f32.mxu0 0.0
    %901 = vmatmul.mubr.f32.gmra.mrb[0].mxu0 %v834
    %v902 = vpop.f32.mrb[0].mxu0
    %v903 = vadd.f32 %v831, %v902
    %v904 = vpop.f32.mrb[0].mxu0
    %905 = vdwg.mxu0
    %v906 = vmax.f32 %v903, 0.0
    %s907 = scalar_lea.vmem %s5, 32
    %v908 = vld [vmem:[%s907] sm:$0xff]
    %v909 = vld [vmem:[%s907 + $0x8] sm:$0xff]
    %v910 = vld [vmem:[%s907 + $0x10] sm:$0xff]
    %v911 = vld [vmem:[%s907 + $0x18] sm:$0xff]
    %s912 = scalar_lea.vmem %s6, 1
    %v913 = vld [vmem:[%s912] sm:$0x1]
    %v915 = vlaneseq
    %v916 = vshrl.u32 %v915, 7
    %v917 = vsub.s32 0, %v916
    %v918 = vrot.slane %v913, %v917
    %v921 = vsel %vm146, %v906, 0
    %923 = vmatprep.subr.mxu0 0.0
    %924 = vmatpush1.msra.mxu0 %v908
    %925 = vmatprep.subr.mxu0 0.0
    %926 = vmatpush1.msra.mxu0 %v909
    %927 = vmatprep.subr.mxu0 0.0
    %928 = vmatpush1.msra.mxu0 %v910
    %929 = vmatprep.subr.mxu0 0.0
    %930 = vmatpush1.msra.mxu0 %v911
    %931 = vmatprep.subr.mxu0 0.0
    %932 = vmatpush1.msra.mxu0 0.0
    %933 = vmatprep.subr.mxu0 0.0
    %934 = vmatpush1.msra.mxu0 0.0
    %935 = vmatprep.subr.mxu0 0.0
    %936 = vmatpush1.msra.mxu0 0.0
    %937 = vmatprep.subr.mxu0 0.0
    %938 = vmatpush1.msra.mxu0 0.0
    %939 = vmatprep.subr.mxu0 0.0
    %940 = vmatpush1.msra.mxu0 0.0
    %941 = vmatprep.subr.mxu0 0.0
    %942 = vmatpush1.msra.mxu0 0.0
    %943 = vmatprep.subr.mxu0 0.0
    %944 = vmatpush1.msra.mxu0 0.0
    %945 = vmatprep.subr.mxu0 0.0
    %946 = vmatpush1.msra.mxu0 0.0
    %947 = vmatprep.subr.mxu0 0.0
    %948 = vmatpush1.msra.mxu0 0.0
    %949 = vmatprep.subr.mxu0 0.0
    %950 = vmatpush1.msra.mxu0 0.0
    %951 = vmatprep.subr.mxu0 0.0
    %952 = vmatpush1.msra.mxu0 0.0
    %953 = vmatprep.subr.mxu0 0.0
    %954 = vmatpush1.msra.mxu0 0.0
    %955 = vmatprep.subr.mxu0 0.0
    %956 = vmatpush1.msra.mxu0 0.0
    %957 = vmatprep.subr.mxu0 0.0
    %958 = vmatpush1.msra.mxu0 0.0
    %959 = vmatprep.subr.mxu0 0.0
    %960 = vmatpush1.msra.mxu0 0.0
    %961 = vmatprep.subr.mxu0 0.0
    %962 = vmatpush1.msra.mxu0 0.0
    %963 = vmatprep.subr.mxu0 0.0
    %964 = vmatpush1.msra.mxu0 0.0
    %965 = vmatprep.subr.mxu0 0.0
    %966 = vmatpush1.msra.mxu0 0.0
    %967 = vmatprep.subr.mxu0 0.0
    %968 = vmatpush1.msra.mxu0 0.0
    %969 = vmatprep.subr.mxu0 0.0
    %970 = vmatpush1.msra.mxu0 0.0
    %971 = vmatprep.subr.mxu0 0.0
    %972 = vmatpush1.msra.mxu0 0.0
    %973 = vmatprep.subr.mxu0 0.0
    %974 = vmatpush1.msra.mxu0 0.0
    %975 = vmatprep.subr.mxu0 0.0
    %976 = vmatpush1.msra.mxu0 0.0
    %977 = vmatprep.subr.mxu0 0.0
    %978 = vmatpush1.msra.mxu0 0.0
    %979 = vmatprep.subr.mxu0 0.0
    %980 = vmatpush1.msra.mxu0 0.0
    %981 = vmatprep.subr.mxu0 0.0
    %982 = vmatpush1.msra.mxu0 0.0
    %983 = vmatprep.subr.mxu0 0.0
    %984 = vmatpush1.msra.mxu0 0.0
    %985 = vmatprep.subr.mxu0 0.0
    %986 = vmatpush1.msra.mxu0 0.0
    %987 = vmatprep.mubr.f32.mxu0 0.0
    %988 = vmatmul.mubr.f32.gmra.mrb[0].mxu0 %v921
    %v989 = vpop.f32.mrb[0].mxu0
    %v990 = vadd.f32 %v918, %v989
    %v991 = vpop.f32.mrb[0].mxu0
    %992 = vdwg.mxu0
    %s993 = scalar_lea.vmem %s7, 32
    %v994 = vld [vmem:[%s993] sm:$0xff]
    %v995 = vld [vmem:[%s993 + $0x8] sm:$0xff]
    %v996 = vld [vmem:[%s993 + $0x10] sm:$0xff]
    %v997 = vld [vmem:[%s993 + $0x18] sm:$0xff]
    %s998 = scalar_lea.vmem %s8, 1
    %v999 = vld [vmem:[%s998] sm:$0x1]
    %v1001 = vlaneseq
    %v1002 = vshrl.u32 %v1001, 7
    %v1003 = vsub.s32 0, %v1002
    %v1004 = vrot.slane %v999, %v1003
    %1006 = vmatprep.subr.mxu0 0.0
    %1007 = vmatpush1.msra.mxu0 %v994
    %1008 = vmatprep.subr.mxu0 0.0
    %1009 = vmatpush1.msra.mxu0 %v995
    %1010 = vmatprep.subr.mxu0 0.0
    %1011 = vmatpush1.msra.mxu0 %v996
    %1012 = vmatprep.subr.mxu0 0.0
    %1013 = vmatpush1.msra.mxu0 %v997
    %1014 = vmatprep.subr.mxu0 0.0
    %1015 = vmatpush1.msra.mxu0 0.0
    %1016 = vmatprep.subr.mxu0 0.0
    %1017 = vmatpush1.msra.mxu0 0.0
    %1018 = vmatprep.subr.mxu0 0.0
    %1019 = vmatpush1.msra.mxu0 0.0
    %1020 = vmatprep.subr.mxu0 0.0
    %1021 = vmatpush1.msra.mxu0 0.0
    %1022 = vmatprep.subr.mxu0 0.0
    %1023 = vmatpush1.msra.mxu0 0.0
    %1024 = vmatprep.subr.mxu0 0.0
    %1025 = vmatpush1.msra.mxu0 0.0
    %1026 = vmatprep.subr.mxu0 0.0
    %1027 = vmatpush1.msra.mxu0 0.0
    %1028 = vmatprep.subr.mxu0 0.0
    %1029 = vmatpush1.msra.mxu0 0.0
    %1030 = vmatprep.subr.mxu0 0.0
    %1031 = vmatpush1.msra.mxu0 0.0
    %1032 = vmatprep.subr.mxu0 0.0
    %1033 = vmatpush1.msra.mxu0 0.0
    %1034 = vmatprep.subr.mxu0 0.0
    %1035 = vmatpush1.msra.mxu0 0.0
    %1036 = vmatprep.subr.mxu0 0.0
    %1037 = vmatpush1.msra.mxu0 0.0
    %1038 = vmatprep.subr.mxu0 0.0
    %1039 = vmatpush1.msra.mxu0 0.0
    %1040 = vmatprep.subr.mxu0 0.0
    %1041 = vmatpush1.msra.mxu0 0.0
    %1042 = vmatprep.subr.mxu0 0.0
    %1043 = vmatpush1.msra.mxu0 0.0
    %1044 = vmatprep.subr.mxu0 0.0
    %1045 = vmatpush1.msra.mxu0 0.0
    %1046 = vmatprep.subr.mxu0 0.0
    %1047 = vmatpush1.msra.mxu0 0.0
    %1048 = vmatprep.subr.mxu0 0.0
    %1049 = vmatpush1.msra.mxu0 0.0
    %1050 = vmatprep.subr.mxu0 0.0
    %1051 = vmatpush1.msra.mxu0 0.0
    %1052 = vmatprep.subr.mxu0 0.0
    %1053 = vmatpush1.msra.mxu0 0.0
    %1054 = vmatprep.subr.mxu0 0.0
    %1055 = vmatpush1.msra.mxu0 0.0
    %1056 = vmatprep.subr.mxu0 0.0
    %1057 = vmatpush1.msra.mxu0 0.0
    %1058 = vmatprep.subr.mxu0 0.0
    %1059 = vmatpush1.msra.mxu0 0.0
    %1060 = vmatprep.subr.mxu0 0.0
    %1061 = vmatpush1.msra.mxu0 0.0
    %1062 = vmatprep.subr.mxu0 0.0
    %1063 = vmatpush1.msra.mxu0 0.0
    %1064 = vmatprep.subr.mxu0 0.0
    %1065 = vmatpush1.msra.mxu0 0.0
    %1066 = vmatprep.subr.mxu0 0.0
    %1067 = vmatpush1.msra.mxu0 0.0
    %1068 = vmatprep.subr.mxu0 0.0
    %1069 = vmatpush1.msra.mxu0 0.0
    %1070 = vmatprep.mubr.f32.mxu0 0.0
    %1071 = vmatmul.mubr.f32.gmra.mrb[0].mxu0 %v921
    %v1072 = vpop.f32.mrb[0].mxu0
    %v1073 = vadd.f32 %v1004, %v1072
    %v1074 = vpop.f32.mrb[0].mxu0
    %1075 = vdwg.mxu0
    %v1076 = vadd.f32 %v560, %v1073
    %v1077 = vsub.f32 %v561, %v990
    %s1078 = scalar_lea.vmem %s1, 32
    %v1079 = vld [vmem:[%s1078] sm:$0xff]
    %v1080 = vld [vmem:[%s1078 + $0x8] sm:$0xff]
    %s1081 = scalar_lea.vmem %s2, 2
    %v1082 = vld [vmem:[%s1081] sm:$0x1]
    %v1084 = vlaneseq
    %v1085 = vshrl.u32 %v1084, 7
    %v1086 = vsub.s32 0, %v1085
    %v1087 = vrot.slane %v1082, %v1086
    %v1090 = vsel %vm62, %v1077, 0
    %1092 = vmatprep.subr.mxu0 0.0
    %1093 = vmatpush1.msra.mxu0 %v1079
    %1094 = vmatprep.subr.mxu0 0.0
    %1095 = vmatpush1.msra.mxu0 %v1080
    %1096 = vmatprep.subr.mxu0 0.0
    %1097 = vmatpush1.msra.mxu0 0.0
    %1098 = vmatprep.subr.mxu0 0.0
    %1099 = vmatpush1.msra.mxu0 0.0
    %1100 = vmatprep.subr.mxu0 0.0
    %1101 = vmatpush1.msra.mxu0 0.0
    %1102 = vmatprep.subr.mxu0 0.0
    %1103 = vmatpush1.msra.mxu0 0.0
    %1104 = vmatprep.subr.mxu0 0.0
    %1105 = vmatpush1.msra.mxu0 0.0
    %1106 = vmatprep.subr.mxu0 0.0
    %1107 = vmatpush1.msra.mxu0 0.0
    %1108 = vmatprep.subr.mxu0 0.0
    %1109 = vmatpush1.msra.mxu0 0.0
    %1110 = vmatprep.subr.mxu0 0.0
    %1111 = vmatpush1.msra.mxu0 0.0
    %1112 = vmatprep.subr.mxu0 0.0
    %1113 = vmatpush1.msra.mxu0 0.0
    %1114 = vmatprep.subr.mxu0 0.0
    %1115 = vmatpush1.msra.mxu0 0.0
    %1116 = vmatprep.subr.mxu0 0.0
    %1117 = vmatpush1.msra.mxu0 0.0
    %1118 = vmatprep.subr.mxu0 0.0
    %1119 = vmatpush1.msra.mxu0 0.0
    %1120 = vmatprep.subr.mxu0 0.0
    %1121 = vmatpush1.msra.mxu0 0.0
    %1122 = vmatprep.subr.mxu0 0.0
    %1123 = vmatpush1.msra.mxu0 0.0
    %1124 = vmatprep.subr.mxu0 0.0
    %1125 = vmatpush1.msra.mxu0 0.0
    %1126 = vmatprep.subr.mxu0 0.0
    %1127 = vmatpush1.msra.mxu0 0.0
    %1128 = vmatprep.subr.mxu0 0.0
    %1129 = vmatpush1.msra.mxu0 0.0
    %1130 = vmatprep.subr.mxu0 0.0
    %1131 = vmatpush1.msra.mxu0 0.0
    %1132 = vmatprep.subr.mxu0 0.0
    %1133 = vmatpush1.msra.mxu0 0.0
    %1134 = vmatprep.subr.mxu0 0.0
    %1135 = vmatpush1.msra.mxu0 0.0
    %1136 = vmatprep.subr.mxu0 0.0
    %1137 = vmatpush1.msra.mxu0 0.0
    %1138 = vmatprep.subr.mxu0 0.0
    %1139 = vmatpush1.msra.mxu0 0.0
    %1140 = vmatprep.subr.mxu0 0.0
    %1141 = vmatpush1.msra.mxu0 0.0
    %1142 = vmatprep.subr.mxu0 0.0
    %1143 = vmatpush1.msra.mxu0 0.0
    %1144 = vmatprep.subr.mxu0 0.0
    %1145 = vmatpush1.msra.mxu0 0.0
    %1146 = vmatprep.subr.mxu0 0.0
    %1147 = vmatpush1.msra.mxu0 0.0
    %1148 = vmatprep.subr.mxu0 0.0
    %1149 = vmatpush1.msra.mxu0 0.0
    %1150 = vmatprep.subr.mxu0 0.0
    %1151 = vmatpush1.msra.mxu0 0.0
    %1152 = vmatprep.subr.mxu0 0.0
    %1153 = vmatpush1.msra.mxu0 0.0
    %1154 = vmatprep.subr.mxu0 0.0
    %1155 = vmatpush1.msra.mxu0 0.0
    %1156 = vmatprep.mubr.f32.mxu0 0.0
    %1157 = vmatmul.mubr.f32.gmra.mrb[0].mxu0 %v1090
    %v1158 = vpop.f32.mrb[0].mxu0
    %v1159 = vadd.f32 %v1087, %v1158
    %v1160 = vpop.f32.mrb[0].mxu0
    %1161 = vdwg.mxu0
    %s1162 = scalar_lea.vmem [#allocation2], 192
    %v1163 = vld [vmem:[%s1162] sm:$0xff]
    %v1164 = vld [vmem:[%s1162 + $0x8] sm:$0xff]
    %v1165 = vld [vmem:[%s1162 + $0x10] sm:$0xff]
    %v1166 = vld [vmem:[%s1162 + $0x18] sm:$0xff]
    %s1167 = scalar_lea.vmem %s4, 6
    %v1168 = vld [vmem:[%s1167] sm:$0x1]
    %v1170 = vlaneseq
    %v1171 = vshrl.u32 %v1170, 7
    %v1172 = vsub.s32 0, %v1171
    %v1173 = vrot.slane %v1168, %v1172
    %v1176 = vsel %vm146, %v1159, 0
    %1178 = vmatprep.subr.mxu0 0.0
    %1179 = vmatpush1.msra.mxu0 %v1163
    %1180 = vmatprep.subr.mxu0 0.0
    %1181 = vmatpush1.msra.mxu0 %v1164
    %1182 = vmatprep.subr.mxu0 0.0
    %1183 = vmatpush1.msra.mxu0 %v1165
    %1184 = vmatprep.subr.mxu0 0.0
    %1185 = vmatpush1.msra.mxu0 %v1166
    %1186 = vmatprep.subr.mxu0 0.0
    %1187 = vmatpush1.msra.mxu0 0.0
    %1188 = vmatprep.subr.mxu0 0.0
    %1189 = vmatpush1.msra.mxu0 0.0
    %1190 = vmatprep.subr.mxu0 0.0
    %1191 = vmatpush1.msra.mxu0 0.0
    %1192 = vmatprep.subr.mxu0 0.0
    %1193 = vmatpush1.msra.mxu0 0.0
    %1194 = vmatprep.subr.mxu0 0.0
    %1195 = vmatpush1.msra.mxu0 0.0
    %1196 = vmatprep.subr.mxu0 0.0
    %1197 = vmatpush1.msra.mxu0 0.0
    %1198 = vmatprep.subr.mxu0 0.0
    %1199 = vmatpush1.msra.mxu0 0.0
    %1200 = vmatprep.subr.mxu0 0.0
    %1201 = vmatpush1.msra.mxu0 0.0
    %1202 = vmatprep.subr.mxu0 0.0
    %1203 = vmatpush1.msra.mxu0 0.0
    %1204 = vmatprep.subr.mxu0 0.0
    %1205 = vmatpush1.msra.mxu0 0.0
    %1206 = vmatprep.subr.mxu0 0.0
    %1207 = vmatpush1.msra.mxu0 0.0
    %1208 = vmatprep.subr.mxu0 0.0
    %1209 = vmatpush1.msra.mxu0 0.0
    %1210 = vmatprep.subr.mxu0 0.0
    %1211 = vmatpush1.msra.mxu0 0.0
    %1212 = vmatprep.subr.mxu0 0.0
    %1213 = vmatpush1.msra.mxu0 0.0
    %1214 = vmatprep.subr.mxu0 0.0
    %1215 = vmatpush1.msra.mxu0 0.0
    %1216 = vmatprep.subr.mxu0 0.0
    %1217 = vmatpush1.msra.mxu0 0.0
    %1218 = vmatprep.subr.mxu0 0.0
    %1219 = vmatpush1.msra.mxu0 0.0
    %1220 = vmatprep.subr.mxu0 0.0
    %1221 = vmatpush1.msra.mxu0 0.0
    %1222 = vmatprep.subr.mxu0 0.0
    %1223 = vmatpush1.msra.mxu0 0.0
    %1224 = vmatprep.subr.mxu0 0.0
    %1225 = vmatpush1.msra.mxu0 0.0
    %1226 = vmatprep.subr.mxu0 0.0
    %1227 = vmatpush1.msra.mxu0 0.0
    %1228 = vmatprep.subr.mxu0 0.0
    %1229 = vmatpush1.msra.mxu0 0.0
    %1230 = vmatprep.subr.mxu0 0.0
    %1231 = vmatpush1.msra.mxu0 0.0
    %1232 = vmatprep.subr.mxu0 0.0
    %1233 = vmatpush1.msra.mxu0 0.0
    %1234 = vmatprep.subr.mxu0 0.0
    %1235 = vmatpush1.msra.mxu0 0.0
    %1236 = vmatprep.subr.mxu0 0.0
    %1237 = vmatpush1.msra.mxu0 0.0
    %1238 = vmatprep.subr.mxu0 0.0
    %1239 = vmatpush1.msra.mxu0 0.0
    %1240 = vmatprep.subr.mxu0 0.0
    %1241 = vmatpush1.msra.mxu0 0.0
    %1242 = vmatprep.mubr.f32.mxu0 0.0
    %1243 = vmatmul.mubr.f32.gmra.mrb[0].mxu0 %v1176
    %v1244 = vpop.f32.mrb[0].mxu0
    %v1245 = vadd.f32 %v1173, %v1244
    %v1246 = vpop.f32.mrb[0].mxu0
    %1247 = vdwg.mxu0
    %v1248 = vmax.f32 %v1245, 0.0
    %s1249 = scalar_lea.vmem [#allocation2], 224
    %v1250 = vld [vmem:[%s1249] sm:$0xff]
    %v1251 = vld [vmem:[%s1249 + $0x8] sm:$0xff]
    %v1252 = vld [vmem:[%s1249 + $0x10] sm:$0xff]
    %v1253 = vld [vmem:[%s1249 + $0x18] sm:$0xff]
    %s1254 = scalar_lea.vmem %s4, 7
    %v1255 = vld [vmem:[%s1254] sm:$0x1]
    %v1257 = vlaneseq
    %v1258 = vshrl.u32 %v1257, 7
    %v1259 = vsub.s32 0, %v1258
    %v1260 = vrot.slane %v1255, %v1259
    %v1263 = vsel %vm146, %v1248, 0
    %1265 = vmatprep.subr.mxu0 0.0
    %1266 = vmatpush1.msra.mxu0 %v1250
    %1267 = vmatprep.subr.mxu0 0.0
    %1268 = vmatpush1.msra.mxu0 %v1251
    %1269 = vmatprep.subr.mxu0 0.0
    %1270 = vmatpush1.msra.mxu0 %v1252
    %1271 = vmatprep.subr.mxu0 0.0
    %1272 = vmatpush1.msra.mxu0 %v1253
    %1273 = vmatprep.subr.mxu0 0.0
    %1274 = vmatpush1.msra.mxu0 0.0
    %1275 = vmatprep.subr.mxu0 0.0
    %1276 = vmatpush1.msra.mxu0 0.0
    %1277 = vmatprep.subr.mxu0 0.0
    %1278 = vmatpush1.msra.mxu0 0.0
    %1279 = vmatprep.subr.mxu0 0.0
    %1280 = vmatpush1.msra.mxu0 0.0
    %1281 = vmatprep.subr.mxu0 0.0
    %1282 = vmatpush1.msra.mxu0 0.0
    %1283 = vmatprep.subr.mxu0 0.0
    %1284 = vmatpush1.msra.mxu0 0.0
    %1285 = vmatprep.subr.mxu0 0.0
    %1286 = vmatpush1.msra.mxu0 0.0
    %1287 = vmatprep.subr.mxu0 0.0
    %1288 = vmatpush1.msra.mxu0 0.0
    %1289 = vmatprep.subr.mxu0 0.0
    %1290 = vmatpush1.msra.mxu0 0.0
    %1291 = vmatprep.subr.mxu0 0.0
    %1292 = vmatpush1.msra.mxu0 0.0
    %1293 = vmatprep.subr.mxu0 0.0
    %1294 = vmatpush1.msra.mxu0 0.0
    %1295 = vmatprep.subr.mxu0 0.0
    %1296 = vmatpush1.msra.mxu0 0.0
    %1297 = vmatprep.subr.mxu0 0.0
    %1298 = vmatpush1.msra.mxu0 0.0
    %1299 = vmatprep.subr.mxu0 0.0
    %1300 = vmatpush1.msra.mxu0 0.0
    %1301 = vmatprep.subr.mxu0 0.0
    %1302 = vmatpush1.msra.mxu0 0.0
    %1303 = vmatprep.subr.mxu0 0.0
    %1304 = vmatpush1.msra.mxu0 0.0
    %1305 = vmatprep.subr.mxu0 0.0
    %1306 = vmatpush1.msra.mxu0 0.0
    %1307 = vmatprep.subr.mxu0 0.0
    %1308 = vmatpush1.msra.mxu0 0.0
    %1309 = vmatprep.subr.mxu0 0.0
    %1310 = vmatpush1.msra.mxu0 0.0
    %1311 = vmatprep.subr.mxu0 0.0
    %1312 = vmatpush1.msra.mxu0 0.0
    %1313 = vmatprep.subr.mxu0 0.0
    %1314 = vmatpush1.msra.mxu0 0.0
    %1315 = vmatprep.subr.mxu0 0.0
    %1316 = vmatpush1.msra.mxu0 0.0
    %1317 = vmatprep.subr.mxu0 0.0
    %1318 = vmatpush1.msra.mxu0 0.0
    %1319 = vmatprep.subr.mxu0 0.0
    %1320 = vmatpush1.msra.mxu0 0.0
    %1321 = vmatprep.subr.mxu0 0.0
    %1322 = vmatpush1.msra.mxu0 0.0
    %1323 = vmatprep.subr.mxu0 0.0
    %1324 = vmatpush1.msra.mxu0 0.0
    %1325 = vmatprep.subr.mxu0 0.0
    %1326 = vmatpush1.msra.mxu0 0.0
    %1327 = vmatprep.subr.mxu0 0.0
    %1328 = vmatpush1.msra.mxu0 0.0
    %1329 = vmatprep.mubr.f32.mxu0 0.0
    %1330 = vmatmul.mubr.f32.gmra.mrb[0].mxu0 %v1263
    %v1331 = vpop.f32.mrb[0].mxu0
    %v1332 = vadd.f32 %v1260, %v1331
    %v1333 = vpop.f32.mrb[0].mxu0
    %1334 = vdwg.mxu0
    %v1335 = vmax.f32 %v1332, 0.0
    %s1336 = scalar_lea.vmem [#allocation2], 256
    %v1337 = vld [vmem:[%s1336] sm:$0xff]
    %v1338 = vld [vmem:[%s1336 + $0x8] sm:$0xff]
    %v1339 = vld [vmem:[%s1336 + $0x10] sm:$0xff]
    %v1340 = vld [vmem:[%s1336 + $0x18] sm:$0xff]
    %s1341 = scalar_lea.vmem %s4, 8
    %v1342 = vld [vmem:[%s1341] sm:$0x1]
    %v1344 = vlaneseq
    %v1345 = vshrl.u32 %v1344, 7
    %v1346 = vsub.s32 0, %v1345
    %v1347 = vrot.slane %v1342, %v1346
    %v1350 = vsel %vm146, %v1335, 0
    %1352 = vmatprep.subr.mxu0 0.0
    %1353 = vmatpush1.msra.mxu0 %v1337
    %1354 = vmatprep.subr.mxu0 0.0
    %1355 = vmatpush1.msra.mxu0 %v1338
    %1356 = vmatprep.subr.mxu0 0.0
    %1357 = vmatpush1.msra.mxu0 %v1339
    %1358 = vmatprep.subr.mxu0 0.0
    %1359 = vmatpush1.msra.mxu0 %v1340
    %1360 = vmatprep.subr.mxu0 0.0
    %1361 = vmatpush1.msra.mxu0 0.0
    %1362 = vmatprep.subr.mxu0 0.0
    %1363 = vmatpush1.msra.mxu0 0.0
    %1364 = vmatprep.subr.mxu0 0.0
    %1365 = vmatpush1.msra.mxu0 0.0
    %1366 = vmatprep.subr.mxu0 0.0
    %1367 = vmatpush1.msra.mxu0 0.0
    %1368 = vmatprep.subr.mxu0 0.0
    %1369 = vmatpush1.msra.mxu0 0.0
    %1370 = vmatprep.subr.mxu0 0.0
    %1371 = vmatpush1.msra.mxu0 0.0
    %1372 = vmatprep.subr.mxu0 0.0
    %1373 = vmatpush1.msra.mxu0 0.0
    %1374 = vmatprep.subr.mxu0 0.0
    %1375 = vmatpush1.msra.mxu0 0.0
    %1376 = vmatprep.subr.mxu0 0.0
    %1377 = vmatpush1.msra.mxu0 0.0
    %1378 = vmatprep.subr.mxu0 0.0
    %1379 = vmatpush1.msra.mxu0 0.0
    %1380 = vmatprep.subr.mxu0 0.0
    %1381 = vmatpush1.msra.mxu0 0.0
    %1382 = vmatprep.subr.mxu0 0.0
    %1383 = vmatpush1.msra.mxu0 0.0
    %1384 = vmatprep.subr.mxu0 0.0
    %1385 = vmatpush1.msra.mxu0 0.0
    %1386 = vmatprep.subr.mxu0 0.0
    %1387 = vmatpush1.msra.mxu0 0.0
    %1388 = vmatprep.subr.mxu0 0.0
    %1389 = vmatpush1.msra.mxu0 0.0
    %1390 = vmatprep.subr.mxu0 0.0
    %1391 = vmatpush1.msra.mxu0 0.0
    %1392 = vmatprep.subr.mxu0 0.0
    %1393 = vmatpush1.msra.mxu0 0.0
    %1394 = vmatprep.subr.mxu0 0.0
    %1395 = vmatpush1.msra.mxu0 0.0
    %1396 = vmatprep.subr.mxu0 0.0
    %1397 = vmatpush1.msra.mxu0 0.0
    %1398 = vmatprep.subr.mxu0 0.0
    %1399 = vmatpush1.msra.mxu0 0.0
    %1400 = vmatprep.subr.mxu0 0.0
    %1401 = vmatpush1.msra.mxu0 0.0
    %1402 = vmatprep.subr.mxu0 0.0
    %1403 = vmatpush1.msra.mxu0 0.0
    %1404 = vmatprep.subr.mxu0 0.0
    %1405 = vmatpush1.msra.mxu0 0.0
    %1406 = vmatprep.subr.mxu0 0.0
    %1407 = vmatpush1.msra.mxu0 0.0
    %1408 = vmatprep.subr.mxu0 0.0
    %1409 = vmatpush1.msra.mxu0 0.0
    %1410 = vmatprep.subr.mxu0 0.0
    %1411 = vmatpush1.msra.mxu0 0.0
    %1412 = vmatprep.subr.mxu0 0.0
    %1413 = vmatpush1.msra.mxu0 0.0
    %1414 = vmatprep.subr.mxu0 0.0
    %1415 = vmatpush1.msra.mxu0 0.0
    %1416 = vmatprep.mubr.f32.mxu0 0.0
    %1417 = vmatmul.mubr.f32.gmra.mrb[0].mxu0 %v1350
    %v1418 = vpop.f32.mrb[0].mxu0
    %v1419 = vadd.f32 %v1347, %v1418
    %v1420 = vpop.f32.mrb[0].mxu0
    %1421 = vdwg.mxu0
    %v1422 = vmax.f32 %v1419, 0.0
    %s1423 = scalar_lea.vmem %s7, 64
    %v1424 = vld [vmem:[%s1423] sm:$0xff]
    %v1425 = vld [vmem:[%s1423 + $0x8] sm:$0xff]
    %v1426 = vld [vmem:[%s1423 + $0x10] sm:$0xff]
    %v1427 = vld [vmem:[%s1423 + $0x18] sm:$0xff]
    %s1428 = scalar_lea.vmem %s8, 2
    %v1429 = vld [vmem:[%s1428] sm:$0x1]
    %v1431 = vlaneseq
    %v1432 = vshrl.u32 %v1431, 7
    %v1433 = vsub.s32 0, %v1432
    %v1434 = vrot.slane %v1429, %v1433
    %v1437 = vsel %vm146, %v1422, 0
    %1439 = vmatprep.subr.mxu0 0.0
    %1440 = vmatpush1.msra.mxu0 %v1424
    %1441 = vmatprep.subr.mxu0 0.0
    %1442 = vmatpush1.msra.mxu0 %v1425
    %1443 = vmatprep.subr.mxu0 0.0
    %1444 = vmatpush1.msra.mxu0 %v1426
    %1445 = vmatprep.subr.mxu0 0.0
    %1446 = vmatpush1.msra.mxu0 %v1427
    %1447 = vmatprep.subr.mxu0 0.0
    %1448 = vmatpush1.msra.mxu0 0.0
    %1449 = vmatprep.subr.mxu0 0.0
    %1450 = vmatpush1.msra.mxu0 0.0
    %1451 = vmatprep.subr.mxu0 0.0
    %1452 = vmatpush1.msra.mxu0 0.0
    %1453 = vmatprep.subr.mxu0 0.0
    %1454 = vmatpush1.msra.mxu0 0.0
    %1455 = vmatprep.subr.mxu0 0.0
    %1456 = vmatpush1.msra.mxu0 0.0
    %1457 = vmatprep.subr.mxu0 0.0
    %1458 = vmatpush1.msra.mxu0 0.0
    %1459 = vmatprep.subr.mxu0 0.0
    %1460 = vmatpush1.msra.mxu0 0.0
    %1461 = vmatprep.subr.mxu0 0.0
    %1462 = vmatpush1.msra.mxu0 0.0
    %1463 = vmatprep.subr.mxu0 0.0
    %1464 = vmatpush1.msra.mxu0 0.0
    %1465 = vmatprep.subr.mxu0 0.0
    %1466 = vmatpush1.msra.mxu0 0.0
    %1467 = vmatprep.subr.mxu0 0.0
    %1468 = vmatpush1.msra.mxu0 0.0
    %1469 = vmatprep.subr.mxu0 0.0
    %1470 = vmatpush1.msra.mxu0 0.0
    %1471 = vmatprep.subr.mxu0 0.0
    %1472 = vmatpush1.msra.mxu0 0.0
    %1473 = vmatprep.subr.mxu0 0.0
    %1474 = vmatpush1.msra.mxu0 0.0
    %1475 = vmatprep.subr.mxu0 0.0
    %1476 = vmatpush1.msra.mxu0 0.0
    %1477 = vmatprep.subr.mxu0 0.0
    %1478 = vmatpush1.msra.mxu0 0.0
    %1479 = vmatprep.subr.mxu0 0.0
    %1480 = vmatpush1.msra.mxu0 0.0
    %1481 = vmatprep.subr.mxu0 0.0
    %1482 = vmatpush1.msra.mxu0 0.0
    %1483 = vmatprep.subr.mxu0 0.0
    %1484 = vmatpush1.msra.mxu0 0.0
    %1485 = vmatprep.subr.mxu0 0.0
    %1486 = vmatpush1.msra.mxu0 0.0
    %1487 = vmatprep.subr.mxu0 0.0
    %1488 = vmatpush1.msra.mxu0 0.0
    %1489 = vmatprep.subr.mxu0 0.0
    %1490 = vmatpush1.msra.mxu0 0.0
    %1491 = vmatprep.subr.mxu0 0.0
    %1492 = vmatpush1.msra.mxu0 0.0
    %1493 = vmatprep.subr.mxu0 0.0
    %1494 = vmatpush1.msra.mxu0 0.0
    %1495 = vmatprep.subr.mxu0 0.0
    %1496 = vmatpush1.msra.mxu0 0.0
    %1497 = vmatprep.subr.mxu0 0.0
    %1498 = vmatpush1.msra.mxu0 0.0
    %1499 = vmatprep.subr.mxu0 0.0
    %1500 = vmatpush1.msra.mxu0 0.0
    %1501 = vmatprep.subr.mxu0 0.0
    %1502 = vmatpush1.msra.mxu0 0.0
    %1503 = vmatprep.mubr.f32.mxu0 0.0
    %1504 = vmatmul.mubr.f32.gmra.mrb[0].mxu0 %v1437
    %v1505 = vpop.f32.mrb[0].mxu0
    %v1506 = vadd.f32 %v1434, %v1505
    %v1507 = vpop.f32.mrb[0].mxu0
    %1508 = vdwg.mxu0
    %v1509 = vadd.f32 %v1076, %v1506
    %vm1510 = vcmask 60416
    %1511 = vst.msk [vmem:[#allocation5] sm:$0xf] %vm1510, %v1509
    // Predicated region
    $region42: #{nbeats_forward.1} parent=1 // pred_check
      _
    $region43: #{nbeats_forward.1} parent=1 // pred_check_branch
      %1513 = sbr.rel (0) target = $region45
    $region44: #{nbeats_forward.1} parent=1 // pred_region
      %s1515 = ssub.s32 64, 64
      %1516 = vsyncadd [#allocation4], %s1515
      %s1518 = sshll.u32 [#allocation5], 4
      %s1519 = int_to_ptr.vmem [resolvable:$true] %s1518
      %1521 = dma.vmem_to_hbm [thread:$0]  %s1519, 64, %s9, [#allocation4]
    $region45: #{nbeats_forward.1} parent=1 // pred_fallthru
      _
    // Predicated region
    $region46: #{nbeats_forward.1} parent=1 // pred_check
      _
    $region47: #{nbeats_forward.1} parent=1 // pred_check_branch
      %1523 = sbr.rel (0) target = $region49
    $region48: #{nbeats_forward.1} parent=1 // pred_region
      %1524 = dma.done [#allocation4], 64
    $region49: #{nbeats_forward.1} parent=1 // pred_fallthru
      _
    %1525 = vsyncpa [#allocation3], 1
    %1526 = vsyncpa [#allocation4], 1

</llo_original>
